<compile_context>
chip_gen: v5e
topology: v5e:2x2
jax: 0.10.0
libtpu: 0.0.40
codegen_flags: <defaults>
</compile_context>

<pallas_src>
import jax
import jax.numpy as jnp
from jax import lax
from jax.experimental import pallas as pl
from jax.experimental.pallas import tpu as pltpu
import numpy as np


B_TILE = 16   # samples per grid step: conv1 M = B_TILE*H = 256, conv2 M = B_TILE*H/2 = 128


def cnn_fused_kernel(xs_ref, r1_ref, b1_ref, r2_ref, b2_ref, mask_ref,
                     w1_ref, bf1_ref, w2_ref, bf2_ref,
                     out_ref, h1_ref, p1_ref, h2_ref, p2_ref):
    # Shapes for H=16, W=8, C1=16, C2=32, B_TILE=16:
    #   xs_ref:   (BT*H, 3*(W+2)) = (256, 30) bf16   conv1 LHS, 3 dy taps pre-stacked on lanes
    #   r1_ref:   (3*(W+2), W*C1) = (30, 128) bf16   conv1 banded weights (merged K,
    #                                                 output cols in [even x | odd x] order)
    #   b1_ref:   (1, W*C1) f32
    #   r2_ref:   (3, W2*C1, W2*C2) = (3, 64, 128) bf16  conv2 banded weights (K = unpadded
    #                                                 pool1 lanes, output cols even/odd x2)
    #   b2_ref:   (1, W2*C2) f32
    #   mask_ref: (2, BT*H2, W2*C1) f32              0/1 masks killing cross-sample y-halo bleed
    #   w1_ref:   (H4, W4*C2, Hd) = (4, 64, 64) bf16 fc1 weights split per pooled row y
    #   bf1_ref:  (1, Hd) f32   w2_ref: (1, Hd) f32  bf2_ref: (1, 1) f32
    #   out_ref:  (BT, 1) f32
    # scratch (f32): h1 (BT*H, W*C1)=(256,128), p1 (BT*H2+2, W2*C1)=(130,64),
    #                h2 (BT*H2, W2*C2)=(128,128), p2 (BT*H4, W4*C2)=(64,64)
    f32 = jnp.float32
    bf16 = jnp.bfloat16

    WC1 = h1_ref.shape[1]
    M2, W2C2 = h2_ref.shape
    W2C1 = p1_ref.shape[1]
    M4, W4C2 = p2_ref.shape
    BT = out_ref.shape[0]
    H4 = M4 // BT

    # ---- conv1: one merged-K MXU GEMM (+ bias + ReLU), lane-dense (x, c) output ----
    acc1 = jnp.dot(xs_ref[...], r1_ref[...], preferred_element_type=f32)
    h1_ref[...] = jnp.maximum(acc1 + b1_ref[...], 0.0)                 # (BT*H, W*C1)

    # ---- maxpool1 2x2: rows via stride-2 loads, cols via one max of the 64-lane halves ----
    rmax1 = jnp.maximum(h1_ref[pl.ds(0, M2, 2), :], h1_ref[pl.ds(1, M2, 2), :])
    pool1 = jnp.maximum(rmax1[:, 0:W2C1], rmax1[:, W2C1:WC1])          # (BT*H2, W2*C1), (x2, c)

    # ---- conv2: per-sample y-halo via a guard-row scratch + 0/1 masks, 3 accumulating GEMMs ----
    p1_ref[0:1, :] = jnp.zeros((1, W2C1), f32)
    p1_ref[M2 + 1:M2 + 2, :] = jnp.zeros((1, W2C1), f32)
    p1_ref[1:M2 + 1, :] = pool1
    up = (p1_ref[pl.ds(0, M2), :] * mask_ref[0]).astype(bf16)          # row y-1 (zero at y==0)
    dn = (p1_ref[pl.ds(2, M2), :] * mask_ref[1]).astype(bf16)          # row y+1 (zero at y==H2-1)
    acc2 = jnp.dot(up, r2_ref[0], preferred_element_type=f32)
    acc2 = acc2 + jnp.dot(pool1.astype(bf16), r2_ref[1], preferred_element_type=f32)
    acc2 = acc2 + jnp.dot(dn, r2_ref[2], preferred_element_type=f32)
    h2_ref[...] = jnp.maximum(acc2 + b2_ref[...], 0.0)                 # (BT*H2, W2*C2)

    # ---- maxpool2 2x2 ----
    rmax2 = jnp.maximum(h2_ref[pl.ds(0, M4, 2), :], h2_ref[pl.ds(1, M4, 2), :])
    p2_ref[...] = jnp.maximum(rmax2[:, 0:W4C2], rmax2[:, W4C2:W2C2])   # (BT*H4, W4*C2), (x4, c)

    # ---- fc1 as H4 accumulating GEMMs over stride-H4 per-sample row gathers (no flatten) ----
    hid = jnp.dot(p2_ref[pl.ds(0, BT, H4), :].astype(bf16), w1_ref[0],
                  preferred_element_type=f32)
    for y in range(1, H4):
        hid = hid + jnp.dot(p2_ref[pl.ds(y, BT, H4), :].astype(bf16), w1_ref[y],
                            preferred_element_type=f32)
    hid = jnp.maximum(hid + bf1_ref[...], 0.0)                         # (BT, Hd)

    # ---- fc2 as VPU multiply + lane reduction, then sigmoid; one (BT, 1) store ----
    z = jnp.sum(hid * w2_ref[...], axis=-1, keepdims=True) + bf2_ref[...]
    out_ref[...] = 1.0 / (1.0 + jnp.exp(-z))


def _banded_conv_weight(w_hwio, width):
    """(3,3,Cin,Cout) HWIO conv weight -> (3, (width+2)*Cin, width*Cout) banded matrices R
    with R[dy, xp*Cin+ci, x*Cout+co] = w[dy, xp-x, ci, co] for 0 <= xp-x < 3 (a zero-padded
    conv along the width axis becomes one GEMM per row tap dy)."""
    kh, kw, cin, cout = w_hwio.shape
    cols = []
    for x in range(width):
        blk = jnp.zeros((kh, width + 2, cin, cout), w_hwio.dtype)
        blk = lax.dynamic_update_slice(blk, w_hwio, (0, x, 0, 0))
        cols.append(blk)
    r = jnp.stack(cols, axis=3)                    # (3, width+2, cin, width, cout)
    return r.reshape(kh, (width + 2) * cin, width * cout)


def _even_odd(width):
    return jnp.array(list(range(0, width, 2)) + list(range(1, width, 2)), jnp.int32)


@jax.jit
def cnn_forward(x_nchw, params):
    B, _, H, W = x_nchw.shape
    assert H % 4 == 0 and W % 4 == 0, "two 2x2 maxpools require H, W divisible by 4"
    C1 = params["w1"].shape[-1]
    C2 = params["w2"].shape[-1]
    Hd = params["b1_fc"].shape[0]
    H2, W2, H4, W4 = H // 2, W // 2, H // 4, W // 4
    Wp = W + 2
    bf16 = jnp.bfloat16
    # Layout is lane-dense (full 128-lane activations) when W*C1 == 128 and W2*C2 == 128
    # (true for the default C1=16, C2=32 with W=8); other shapes remain correct but use
    # partially masked stores.

    BT = B_TILE
    G = (B + BT - 1) // BT
    Bp = G * BT

    # -- input prep: pad batch to a tile multiple, zero-pad spatially, and pre-stack the
    #    three dy taps along lanes so conv1 is one merged-K GEMM per step.
    x = x_nchw[:, 0].astype(jnp.float32)
    if Bp != B:
        x = jnp.pad(x, ((0, Bp - B), (0, 0), (0, 0)))
    xpad = jnp.pad(x, ((0, 0), (1, 1), (1, 1)))                          # (Bp, H+2, W+2)
    xs = jnp.concatenate([xpad[:, dy:dy + H, :] for dy in range(3)], axis=-1)
    xs = xs.reshape(Bp * H, 3 * Wp).astype(bf16)                         # lane = dy*(W+2)+xp

    # -- weight prep (tiny, fused by XLA): bf16 banded conv matrices with output columns
    #    permuted to [even x | odd x] so each pool column step is one max of vreg halves.
    px1, px2 = _even_odd(W), _even_odd(W2)
    r1 = _banded_conv_weight(params["w1"], W).reshape(3 * Wp, W, C1)
    r1 = r1[:, px1, :].reshape(3 * Wp, W * C1).astype(bf16)
    b1 = jnp.tile(params["b1"], W).reshape(W, C1)[px1].reshape(1, W * C1)

    r2 = _banded_conv_weight(params["w2"], W2)[:, C1:(W2 + 1) * C1, :]   # K = W2*C1 (no x halo)
    r2 = r2.reshape(3, W2 * C1, W2, C2)[:, :, px2, :].reshape(3, W2 * C1, W2 * C2).astype(bf16)
    b2 = jnp.tile(params["b2"], W2).reshape(W2, C2)[px2].reshape(1, W2 * C2)

    # 0/1 masks zeroing the conv2 y-halo rows that would otherwise bleed across samples.
    row = jnp.arange(BT * H2) % H2
    mask = jnp.stack([(row != 0), (row != H2 - 1)], axis=0).astype(jnp.float32)
    mask = jnp.tile(mask[:, :, None], (1, 1, W2 * C1))                   # (2, BT*H2, W2*C1)

    # fc1 rows permuted from torch's (c, y, x) flatten order to (y, x, c) and split per y.
    w1fc = params["w1t_fc"].reshape(C2, H4, W4, Hd).transpose(1, 2, 0, 3)
    w1fc = w1fc.reshape(H4, W4 * C2, Hd).astype(bf16)
    bf1 = params["b1_fc"].reshape(1, Hd)
    w2fc = params["w2_fc"].reshape(1, Hd)
    bf2 = params["b2_fc"].reshape(1, 1)

    out = pl.pallas_call(
        cnn_fused_kernel,
        out_shape=jax.ShapeDtypeStruct((Bp, 1), jnp.float32),
        grid=(G,),
        in_specs=[
            pl.BlockSpec((BT * H, 3 * Wp), lambda g: (g, 0)),
            pl.BlockSpec((3 * Wp, W * C1), lambda g: (0, 0)),
            pl.BlockSpec((1, W * C1), lambda g: (0, 0)),
            pl.BlockSpec((3, W2 * C1, W2 * C2), lambda g: (0, 0, 0)),
            pl.BlockSpec((1, W2 * C2), lambda g: (0, 0)),
            pl.BlockSpec((2, BT * H2, W2 * C1), lambda g: (0, 0, 0)),
            pl.BlockSpec((H4, W4 * C2, Hd), lambda g: (0, 0, 0)),
            pl.BlockSpec((1, Hd), lambda g: (0, 0)),
            pl.BlockSpec((1, Hd), lambda g: (0, 0)),
            pl.BlockSpec((1, 1), lambda g: (0, 0)),
        ],
        out_specs=pl.BlockSpec((BT, 1), lambda g: (g, 0)),
        scratch_shapes=[
            pltpu.VMEM((BT * H, W * C1), jnp.float32),
            pltpu.VMEM((BT * H2 + 2, W2 * C1), jnp.float32),
            pltpu.VMEM((BT * H2, W2 * C2), jnp.float32),
            pltpu.VMEM((BT * H4, W4 * C2), jnp.float32),
        ],
        compiler_params=pltpu.CompilerParams(dimension_semantics=("parallel",)),
    )(xs, r1, b1, r2, b2, mask, w1fc, bf1, w2fc, bf2)
    return out[:B]


def init_params(key, slice_len, num_features):
    ks = jax.random.split(key, 8)
    f = slice_len // 4 * (num_features // 4) * 32
    s = 0.1
    return dict(
        w1=s * jax.random.normal(ks[0], (3, 3, 1, 16), jnp.float32),      # HWIO
        b1=s * jax.random.normal(ks[1], (16,), jnp.float32),
        w2=s * jax.random.normal(ks[2], (3, 3, 16, 32), jnp.float32),     # HWIO
        b2=s * jax.random.normal(ks[3], (32,), jnp.float32),
        w1t_fc=s * jax.random.normal(ks[4], (f, 64), jnp.float32),        # (in, out)
        b1_fc=s * jax.random.normal(ks[5], (64,), jnp.float32),
        w2_fc=s * jax.random.normal(ks[6], (1, 64), jnp.float32),         # (out=1, in)
        b2_fc=s * jax.random.normal(ks[7], (1,), jnp.float32),
    )


def reference_forward(x_nchw, params):
    # pure-JAX f32 reference mirroring the PyTorch forward pass
    dn = ("NCHW", "HWIO", "NCHW")
    y = lax.conv_general_dilated(x_nchw, params["w1"], (1, 1), [(1, 1), (1, 1)],
                                 dimension_numbers=dn)
    y = jnp.maximum(y + params["b1"].reshape(1, -1, 1, 1), 0.0)
    y = lax.reduce_window(y, -jnp.inf, lax.max, (1, 1, 2, 2), (1, 1, 2, 2), "VALID")
    y = lax.conv_general_dilated(y, params["w2"], (1, 1), [(1, 1), (1, 1)],
                                 dimension_numbers=dn)
    y = jnp.maximum(y + params["b2"].reshape(1, -1, 1, 1), 0.0)
    y = lax.reduce_window(y, -jnp.inf, lax.max, (1, 1, 2, 2), (1, 1, 2, 2), "VALID")
    y = y.reshape(y.shape[0], -1)
    y = jnp.maximum(y @ params["w1t_fc"] + params["b1_fc"], 0.0)
    y = y @ params["w2_fc"].T + params["b2_fc"]
    return jax.nn.sigmoid(y)


if __name__ == "__main__":
    slice_len, num_features = 16, 8          # flattened = 4 * 2 * 32 = 256
    key = jax.random.PRNGKey(0)
    kx, kp = jax.random.split(key)
    x = jax.random.normal(kx, (2, 1, slice_len, num_features), jnp.float32)  # NCHW
    params = init_params(kp, slice_len, num_features)

    out = jax.block_until_ready(cnn_forward(x, params))
    ref = jax.block_until_ready(reference_forward(x, params))

    assert out.shape == (2, 1), out.shape
    # Tolerance 1e-2 accounts for bf16 MXU operands (f32 accumulation); the f32 reference
    # would otherwise match to ~2e-3.
    np.testing.assert_allclose(np.asarray(out), np.asarray(ref), rtol=1e-2, atol=1e-2)
    print("KERNEL_OK")
</pallas_src>

<mosaic_0001>
module attributes {stable_mosaic.version = 11 : i64} {
  func.func @cnn_fused_kernel(%arg0: i32, %arg1: memref<256x30xbf16, #tpu.memory_space<vmem>>, %arg2: memref<30x128xbf16, #tpu.memory_space<vmem>>, %arg3: memref<1x128xf32, #tpu.memory_space<vmem>>, %arg4: memref<3x64x128xbf16, #tpu.memory_space<vmem>>, %arg5: memref<1x128xf32, #tpu.memory_space<vmem>>, %arg6: memref<2x128x64xf32, #tpu.memory_space<vmem>>, %arg7: memref<4x64x64xbf16, #tpu.memory_space<vmem>>, %arg8: memref<1x64xf32, #tpu.memory_space<vmem>>, %arg9: memref<1x64xf32, #tpu.memory_space<vmem>>, %arg10: memref<1x1xf32, #tpu.memory_space<vmem>>, %arg11: memref<16x1xf32, #tpu.memory_space<vmem>>, %arg12: memref<256x128xf32, #tpu.memory_space<vmem>>, %arg13: memref<130x64xf32, #tpu.memory_space<vmem>>, %arg14: memref<128x128xf32, #tpu.memory_space<vmem>>, %arg15: memref<64x64xf32, #tpu.memory_space<vmem>>) attributes {dimension_semantics = [#tpu.dimension_semantics<parallel>], iteration_bounds = array<i64: 1>, scalar_prefetch = 0 : i64, scratch_operands = 4 : i64, tpu.core_type = #tpu.core_type<tc>, window_params = [{transform_indices = @transform_0, window_bounds = array<i64: 256, 30>}, {pipeline_mode = #tpu.pipeline_mode<synchronous>, transform_indices = @transform_1, window_bounds = array<i64: 30, 128>}, {pipeline_mode = #tpu.pipeline_mode<synchronous>, transform_indices = @transform_2, window_bounds = array<i64: 1, 128>}, {pipeline_mode = #tpu.pipeline_mode<synchronous>, transform_indices = @transform_3, window_bounds = array<i64: 3, 64, 128>}, {pipeline_mode = #tpu.pipeline_mode<synchronous>, transform_indices = @transform_4, window_bounds = array<i64: 1, 128>}, {pipeline_mode = #tpu.pipeline_mode<synchronous>, transform_indices = @transform_5, window_bounds = array<i64: 2, 128, 64>}, {pipeline_mode = #tpu.pipeline_mode<synchronous>, transform_indices = @transform_6, window_bounds = array<i64: 4, 64, 64>}, {pipeline_mode = #tpu.pipeline_mode<synchronous>, transform_indices = @transform_7, window_bounds = array<i64: 1, 64>}, {pipeline_mode = #tpu.pipeline_mode<synchronous>, transform_indices = @transform_8, window_bounds = array<i64: 1, 64>}, {pipeline_mode = #tpu.pipeline_mode<synchronous>, transform_indices = @transform_9, window_bounds = array<i64: 1, 1>}, {transform_indices = @transform_10, window_bounds = array<i64: 16, 1>}]} {
    %c0 = arith.constant 0 : index
    %c0_0 = arith.constant 0 : index
    %0 = vector.load %arg1[%c0, %c0_0] : memref<256x30xbf16, #tpu.memory_space<vmem>>, vector<256x30xbf16>
    %c0_1 = arith.constant 0 : index
    %c0_2 = arith.constant 0 : index
    %1 = vector.load %arg2[%c0_1, %c0_2] : memref<30x128xbf16, #tpu.memory_space<vmem>>, vector<30x128xbf16>
    %cst = arith.constant dense<0.000000e+00> : vector<256x128xf32>
    %2 = tpu.matmul %0, %1, %cst {dimension_numbers = #tpu.dot_dimension_numbers<[1], [0], [0], [1], [0, 0, 1, 1], [], []>} : vector<256x30xbf16>, vector<30x128xbf16>, vector<256x128xf32> -> vector<256x128xf32>
    %c0_3 = arith.constant 0 : index
    %c0_4 = arith.constant 0 : index
    %3 = vector.load %arg3[%c0_3, %c0_4] : memref<1x128xf32, #tpu.memory_space<vmem>>, vector<1x128xf32>
    %4 = vector.broadcast %3 : vector<1x128xf32> to vector<256x128xf32>
    %5 = arith.addf %2, %4 : vector<256x128xf32>
    %cst_5 = arith.constant 0.000000e+00 : f32
    %6 = vector.broadcast %cst_5 : f32 to vector<256x128xf32>
    %7 = arith.maximumf %5, %6 : vector<256x128xf32>
    %c0_6 = arith.constant 0 : index
    %c0_7 = arith.constant 0 : index
    %8 = vector.load %arg12[%c0_6, %c0_7] : memref<256x128xf32, #tpu.memory_space<vmem>>, vector<256x128xf32>
    tpu.vector_store %arg12[%c0_6, %c0_7], %7 {strides = array<i32>} : memref<256x128xf32, #tpu.memory_space<vmem>>, vector<256x128xf32>,
    %c0_8 = arith.constant 0 : index
    %c0_9 = arith.constant 0 : index
    %9 = tpu.strided_load %arg12[%c0_8, %c0_9] {strides = array<i32: 2, 1>} : memref<256x128xf32, #tpu.memory_space<vmem>>, vector<128x128xf32>
    %c1 = arith.constant 1 : index
    %c0_10 = arith.constant 0 : index
    %10 = tpu.strided_load %arg12[%c1, %c0_10] {strides = array<i32: 2, 1>} : memref<256x128xf32, #tpu.memory_space<vmem>>, vector<128x128xf32>
    %11 = arith.maximumf %9, %10 : vector<128x128xf32>
    %12 = vector.extract_strided_slice %11 {offsets = [0, 0], sizes = [128, 64], strides = [1, 1]} : vector<128x128xf32> to vector<128x64xf32>
    %13 = vector.extract_strided_slice %11 {offsets = [0, 64], sizes = [128, 64], strides = [1, 1]} : vector<128x128xf32> to vector<128x64xf32>
    %14 = arith.maximumf %12, %13 : vector<128x64xf32>
    %cst_11 = arith.constant 0.000000e+00 : f32
    %15 = vector.broadcast %cst_11 : f32 to vector<1x64xf32>
    %c0_12 = arith.constant 0 : index
    %c0_13 = arith.constant 0 : index
    %16 = vector.load %arg13[%c0_12, %c0_13] : memref<130x64xf32, #tpu.memory_space<vmem>>, vector<1x64xf32>
    tpu.vector_store %arg13[%c0_12, %c0_13], %15 {strides = array<i32>} : memref<130x64xf32, #tpu.memory_space<vmem>>, vector<1x64xf32>,
    %cst_14 = arith.constant 0.000000e+00 : f32
    %17 = vector.broadcast %cst_14 : f32 to vector<1x64xf32>
    %c129 = arith.constant 129 : index
    %c0_15 = arith.constant 0 : index
    %18 = vector.load %arg13[%c129, %c0_15] : memref<130x64xf32, #tpu.memory_space<vmem>>, vector<1x64xf32>
    tpu.vector_store %arg13[%c129, %c0_15], %17 {strides = array<i32>} : memref<130x64xf32, #tpu.memory_space<vmem>>, vector<1x64xf32>,
    %c1_16 = arith.constant 1 : index
    %c0_17 = arith.constant 0 : index
    %19 = vector.load %arg13[%c1_16, %c0_17] : memref<130x64xf32, #tpu.memory_space<vmem>>, vector<128x64xf32>
    tpu.vector_store %arg13[%c1_16, %c0_17], %14 {strides = array<i32>} : memref<130x64xf32, #tpu.memory_space<vmem>>, vector<128x64xf32>,
    %c0_18 = arith.constant 0 : index
    %c0_19 = arith.constant 0 : index
    %20 = vector.load %arg13[%c0_18, %c0_19] : memref<130x64xf32, #tpu.memory_space<vmem>>, vector<128x64xf32>
    %c0_20 = arith.constant 0 : index
    %c0_21 = arith.constant 0 : index
    %c0_22 = arith.constant 0 : index
    %21 = vector.load %arg6[%c0_20, %c0_21, %c0_22] : memref<2x128x64xf32, #tpu.memory_space<vmem>>, vector<1x128x64xf32>
    %22 = vector.shape_cast %21 : vector<1x128x64xf32> to vector<128x64xf32>
    %23 = arith.mulf %20, %22 : vector<128x64xf32>
    %24 = arith.truncf %23 : vector<128x64xf32> to vector<128x64xbf16>
    %c2 = arith.constant 2 : index
    %c0_23 = arith.constant 0 : index
    %25 = vector.load %arg13[%c2, %c0_23] : memref<130x64xf32, #tpu.memory_space<vmem>>, vector<128x64xf32>
    %c1_24 = arith.constant 1 : index
    %c0_25 = arith.constant 0 : index
    %c0_26 = arith.constant 0 : index
    %26 = vector.load %arg6[%c1_24, %c0_25, %c0_26] : memref<2x128x64xf32, #tpu.memory_space<vmem>>, vector<1x128x64xf32>
    %27 = vector.shape_cast %26 : vector<1x128x64xf32> to vector<128x64xf32>
    %28 = arith.mulf %25, %27 : vector<128x64xf32>
    %29 = arith.truncf %28 : vector<128x64xf32> to vector<128x64xbf16>
    %c0_27 = arith.constant 0 : index
    %c0_28 = arith.constant 0 : index
    %c0_29 = arith.constant 0 : index
    %30 = vector.load %arg4[%c0_27, %c0_28, %c0_29] : memref<3x64x128xbf16, #tpu.memory_space<vmem>>, vector<1x64x128xbf16>
    %31 = vector.shape_cast %30 : vector<1x64x128xbf16> to vector<64x128xbf16>
    %cst_30 = arith.constant dense<0.000000e+00> : vector<128x128xf32>
    %32 = tpu.matmul %24, %31, %cst_30 {dimension_numbers = #tpu.dot_dimension_numbers<[1], [0], [0], [1], [0, 0, 1, 1], [], []>} : vector<128x64xbf16>, vector<64x128xbf16>, vector<128x128xf32> -> vector<128x128xf32>
    %33 = arith.truncf %14 : vector<128x64xf32> to vector<128x64xbf16>
    %c1_31 = arith.constant 1 : index
    %c0_32 = arith.constant 0 : index
    %c0_33 = arith.constant 0 : index
    %34 = vector.load %arg4[%c1_31, %c0_32, %c0_33] : memref<3x64x128xbf16, #tpu.memory_space<vmem>>, vector<1x64x128xbf16>
    %35 = vector.shape_cast %34 : vector<1x64x128xbf16> to vector<64x128xbf16>
    %cst_34 = arith.constant dense<0.000000e+00> : vector<128x128xf32>
    %36 = tpu.matmul %33, %35, %cst_34 {dimension_numbers = #tpu.dot_dimension_numbers<[1], [0], [0], [1], [0, 0, 1, 1], [], []>} : vector<128x64xbf16>, vector<64x128xbf16>, vector<128x128xf32> -> vector<128x128xf32>
    %37 = arith.addf %32, %36 : vector<128x128xf32>
    %c2_35 = arith.constant 2 : index
    %c0_36 = arith.constant 0 : index
    %c0_37 = arith.constant 0 : index
    %38 = vector.load %arg4[%c2_35, %c0_36, %c0_37] : memref<3x64x128xbf16, #tpu.memory_space<vmem>>, vector<1x64x128xbf16>
    %39 = vector.shape_cast %38 : vector<1x64x128xbf16> to vector<64x128xbf16>
    %cst_38 = arith.constant dense<0.000000e+00> : vector<128x128xf32>
    %40 = tpu.matmul %29, %39, %cst_38 {dimension_numbers = #tpu.dot_dimension_numbers<[1], [0], [0], [1], [0, 0, 1, 1], [], []>} : vector<128x64xbf16>, vector<64x128xbf16>, vector<128x128xf32> -> vector<128x128xf32>
    %41 = arith.addf %37, %40 : vector<128x128xf32>
    %c0_39 = arith.constant 0 : index
    %c0_40 = arith.constant 0 : index
    %42 = vector.load %arg5[%c0_39, %c0_40] : memref<1x128xf32, #tpu.memory_space<vmem>>, vector<1x128xf32>
    %43 = vector.broadcast %42 : vector<1x128xf32> to vector<128x128xf32>
    %44 = arith.addf %41, %43 : vector<128x128xf32>
    %cst_41 = arith.constant 0.000000e+00 : f32
    %45 = vector.broadcast %cst_41 : f32 to vector<128x128xf32>
    %46 = arith.maximumf %44, %45 : vector<128x128xf32>
    %c0_42 = arith.constant 0 : index
    %c0_43 = arith.constant 0 : index
    %47 = vector.load %arg14[%c0_42, %c0_43] : memref<128x128xf32, #tpu.memory_space<vmem>>, vector<128x128xf32>
    tpu.vector_store %arg14[%c0_42, %c0_43], %46 {strides = array<i32>} : memref<128x128xf32, #tpu.memory_space<vmem>>, vector<128x128xf32>,
    %c0_44 = arith.constant 0 : index
    %c0_45 = arith.constant 0 : index
    %48 = tpu.strided_load %arg14[%c0_44, %c0_45] {strides = array<i32: 2, 1>} : memref<128x128xf32, #tpu.memory_space<vmem>>, vector<64x128xf32>
    %c1_46 = arith.constant 1 : index
    %c0_47 = arith.constant 0 : index
    %49 = tpu.strided_load %arg14[%c1_46, %c0_47] {strides = array<i32: 2, 1>} : memref<128x128xf32, #tpu.memory_space<vmem>>, vector<64x128xf32>
    %50 = arith.maximumf %48, %49 : vector<64x128xf32>
    %51 = vector.extract_strided_slice %50 {offsets = [0, 0], sizes = [64, 64], strides = [1, 1]} : vector<64x128xf32> to vector<64x64xf32>
    %52 = vector.extract_strided_slice %50 {offsets = [0, 64], sizes = [64, 64], strides = [1, 1]} : vector<64x128xf32> to vector<64x64xf32>
    %53 = arith.maximumf %51, %52 : vector<64x64xf32>
    %c0_48 = arith.constant 0 : index
    %c0_49 = arith.constant 0 : index
    %54 = vector.load %arg15[%c0_48, %c0_49] : memref<64x64xf32, #tpu.memory_space<vmem>>, vector<64x64xf32>
    tpu.vector_store %arg15[%c0_48, %c0_49], %53 {strides = array<i32>} : memref<64x64xf32, #tpu.memory_space<vmem>>, vector<64x64xf32>,
    %c0_50 = arith.constant 0 : index
    %c0_51 = arith.constant 0 : index
    %55 = tpu.strided_load %arg15[%c0_50, %c0_51] {strides = array<i32: 4, 1>} : memref<64x64xf32, #tpu.memory_space<vmem>>, vector<16x64xf32>
    %56 = arith.truncf %55 : vector<16x64xf32> to vector<16x64xbf16>
    %c0_52 = arith.constant 0 : index
    %c0_53 = arith.constant 0 : index
    %c0_54 = arith.constant 0 : index
    %57 = vector.load %arg7[%c0_52, %c0_53, %c0_54] : memref<4x64x64xbf16, #tpu.memory_space<vmem>>, vector<1x64x64xbf16>
    %58 = vector.shape_cast %57 : vector<1x64x64xbf16> to vector<64x64xbf16>
    %cst_55 = arith.constant dense<0.000000e+00> : vector<16x64xf32>
    %59 = tpu.matmul %56, %58, %cst_55 {dimension_numbers = #tpu.dot_dimension_numbers<[1], [0], [0], [1], [0, 0, 1, 1], [], []>} : vector<16x64xbf16>, vector<64x64xbf16>, vector<16x64xf32> -> vector<16x64xf32>
    %c1_56 = arith.constant 1 : index
    %c0_57 = arith.constant 0 : index
    %60 = tpu.strided_load %arg15[%c1_56, %c0_57] {strides = array<i32: 4, 1>} : memref<64x64xf32, #tpu.memory_space<vmem>>, vector<16x64xf32>
    %61 = arith.truncf %60 : vector<16x64xf32> to vector<16x64xbf16>
    %c1_58 = arith.constant 1 : index
    %c0_59 = arith.constant 0 : index
    %c0_60 = arith.constant 0 : index
    %62 = vector.load %arg7[%c1_58, %c0_59, %c0_60] : memref<4x64x64xbf16, #tpu.memory_space<vmem>>, vector<1x64x64xbf16>
    %63 = vector.shape_cast %62 : vector<1x64x64xbf16> to vector<64x64xbf16>
    %cst_61 = arith.constant dense<0.000000e+00> : vector<16x64xf32>
    %64 = tpu.matmul %61, %63, %cst_61 {dimension_numbers = #tpu.dot_dimension_numbers<[1], [0], [0], [1], [0, 0, 1, 1], [], []>} : vector<16x64xbf16>, vector<64x64xbf16>, vector<16x64xf32> -> vector<16x64xf32>
    %65 = arith.addf %59, %64 : vector<16x64xf32>
    %c2_62 = arith.constant 2 : index
    %c0_63 = arith.constant 0 : index
    %66 = tpu.strided_load %arg15[%c2_62, %c0_63] {strides = array<i32: 4, 1>} : memref<64x64xf32, #tpu.memory_space<vmem>>, vector<16x64xf32>
    %67 = arith.truncf %66 : vector<16x64xf32> to vector<16x64xbf16>
    %c2_64 = arith.constant 2 : index
    %c0_65 = arith.constant 0 : index
    %c0_66 = arith.constant 0 : index
    %68 = vector.load %arg7[%c2_64, %c0_65, %c0_66] : memref<4x64x64xbf16, #tpu.memory_space<vmem>>, vector<1x64x64xbf16>
    %69 = vector.shape_cast %68 : vector<1x64x64xbf16> to vector<64x64xbf16>
    %cst_67 = arith.constant dense<0.000000e+00> : vector<16x64xf32>
    %70 = tpu.matmul %67, %69, %cst_67 {dimension_numbers = #tpu.dot_dimension_numbers<[1], [0], [0], [1], [0, 0, 1, 1], [], []>} : vector<16x64xbf16>, vector<64x64xbf16>, vector<16x64xf32> -> vector<16x64xf32>
    %71 = arith.addf %65, %70 : vector<16x64xf32>
    %c3 = arith.constant 3 : index
    %c0_68 = arith.constant 0 : index
    %72 = tpu.strided_load %arg15[%c3, %c0_68] {strides = array<i32: 4, 1>} : memref<64x64xf32, #tpu.memory_space<vmem>>, vector<16x64xf32>
    %73 = arith.truncf %72 : vector<16x64xf32> to vector<16x64xbf16>
    %c3_69 = arith.constant 3 : index
    %c0_70 = arith.constant 0 : index
    %c0_71 = arith.constant 0 : index
    %74 = vector.load %arg7[%c3_69, %c0_70, %c0_71] : memref<4x64x64xbf16, #tpu.memory_space<vmem>>, vector<1x64x64xbf16>
    %75 = vector.shape_cast %74 : vector<1x64x64xbf16> to vector<64x64xbf16>
    %cst_72 = arith.constant dense<0.000000e+00> : vector<16x64xf32>
    %76 = tpu.matmul %73, %75, %cst_72 {dimension_numbers = #tpu.dot_dimension_numbers<[1], [0], [0], [1], [0, 0, 1, 1], [], []>} : vector<16x64xbf16>, vector<64x64xbf16>, vector<16x64xf32> -> vector<16x64xf32>
    %77 = arith.addf %71, %76 : vector<16x64xf32>
    %c0_73 = arith.constant 0 : index
    %c0_74 = arith.constant 0 : index
    %78 = vector.load %arg8[%c0_73, %c0_74] : memref<1x64xf32, #tpu.memory_space<vmem>>, vector<1x64xf32>
    %79 = vector.broadcast %78 : vector<1x64xf32> to vector<16x64xf32>
    %80 = arith.addf %77, %79 : vector<16x64xf32>
    %cst_75 = arith.constant 0.000000e+00 : f32
    %81 = vector.broadcast %cst_75 : f32 to vector<16x64xf32>
    %82 = arith.maximumf %80, %81 : vector<16x64xf32>
    %c0_76 = arith.constant 0 : index
    %c0_77 = arith.constant 0 : index
    %83 = vector.load %arg9[%c0_76, %c0_77] : memref<1x64xf32, #tpu.memory_space<vmem>>, vector<1x64xf32>
    %84 = vector.broadcast %83 : vector<1x64xf32> to vector<16x64xf32>
    %85 = arith.mulf %82, %84 : vector<16x64xf32>
    %cst_78 = arith.constant dense<0.000000e+00> : vector<16xf32>
    %86 = vector.multi_reduction <add>, %85, %cst_78 [1] : vector<16x64xf32> to vector<16xf32>
    %87 = vector.shape_cast %86 : vector<16xf32> to vector<16x1xf32>
    %c0_79 = arith.constant 0 : index
    %c0_80 = arith.constant 0 : index
    %88 = vector.load %arg10[%c0_79, %c0_80] : memref<1x1xf32, #tpu.memory_space<vmem>>, vector<1x1xf32>
    %89 = vector.broadcast %88 : vector<1x1xf32> to vector<16x1xf32>
    %90 = arith.addf %87, %89 : vector<16x1xf32>
    %cst_81 = arith.constant 0.000000e+00 : f32
    %91 = vector.broadcast %cst_81 : f32 to vector<16x1xf32>
    %92 = arith.subf %91, %90 : vector<16x1xf32>
    %93 = math.exp %92 : vector<16x1xf32>
    %cst_82 = arith.constant 1.000000e+00 : f32
    %94 = vector.broadcast %cst_82 : f32 to vector<16x1xf32>
    %95 = arith.addf %94, %93 : vector<16x1xf32>
    %cst_83 = arith.constant 1.000000e+00 : f32
    %96 = vector.broadcast %cst_83 : f32 to vector<16x1xf32>
    %97 = arith.divf %96, %95 : vector<16x1xf32>
    %c0_84 = arith.constant 0 : index
    %c0_85 = arith.constant 0 : index
    %98 = vector.load %arg11[%c0_84, %c0_85] : memref<16x1xf32, #tpu.memory_space<vmem>>, vector<16x1xf32>
    tpu.vector_store %arg11[%c0_84, %c0_85], %97 {strides = array<i32>} : memref<16x1xf32, #tpu.memory_space<vmem>>, vector<16x1xf32>,
    return
  }
  func.func @transform_0(%arg0: i32) -> (i32, i32) {
    %c0_i32 = arith.constant 0 : i32
    %c0_i32_0 = arith.constant 0 : i32
    return %arg0, %c0_i32 : i32, i32
  }
  func.func @transform_1(%arg0: i32) -> (i32, i32) {
    %c0_i32 = arith.constant 0 : i32
    %c0_i32_0 = arith.constant 0 : i32
    %c0_i32_1 = arith.constant 0 : i32
    return %c0_i32, %c0_i32_0 : i32, i32
  }
  func.func @transform_2(%arg0: i32) -> (i32, i32) {
    %c0_i32 = arith.constant 0 : i32
    %c0_i32_0 = arith.constant 0 : i32
    %c0_i32_1 = arith.constant 0 : i32
    return %c0_i32, %c0_i32_0 : i32, i32
  }
  func.func @transform_3(%arg0: i32) -> (i32, i32, i32) {
    %c0_i32 = arith.constant 0 : i32
    %c0_i32_0 = arith.constant 0 : i32
    %c0_i32_1 = arith.constant 0 : i32
    %c0_i32_2 = arith.constant 0 : i32
    return %c0_i32, %c0_i32_0, %c0_i32_1 : i32, i32, i32
  }
  func.func @transform_4(%arg0: i32) -> (i32, i32) {
    %c0_i32 = arith.constant 0 : i32
    %c0_i32_0 = arith.constant 0 : i32
    %c0_i32_1 = arith.constant 0 : i32
    return %c0_i32, %c0_i32_0 : i32, i32
  }
  func.func @transform_5(%arg0: i32) -> (i32, i32, i32) {
    %c0_i32 = arith.constant 0 : i32
    %c0_i32_0 = arith.constant 0 : i32
    %c0_i32_1 = arith.constant 0 : i32
    %c0_i32_2 = arith.constant 0 : i32
    return %c0_i32, %c0_i32_0, %c0_i32_1 : i32, i32, i32
  }
  func.func @transform_6(%arg0: i32) -> (i32, i32, i32) {
    %c0_i32 = arith.constant 0 : i32
    %c0_i32_0 = arith.constant 0 : i32
    %c0_i32_1 = arith.constant 0 : i32
    %c0_i32_2 = arith.constant 0 : i32
    return %c0_i32, %c0_i32_0, %c0_i32_1 : i32, i32, i32
  }
  func.func @transform_7(%arg0: i32) -> (i32, i32) {
    %c0_i32 = arith.constant 0 : i32
    %c0_i32_0 = arith.constant 0 : i32
    %c0_i32_1 = arith.constant 0 : i32
    return %c0_i32, %c0_i32_0 : i32, i32
  }
  func.func @transform_8(%arg0: i32) -> (i32, i32) {
    %c0_i32 = arith.constant 0 : i32
    %c0_i32_0 = arith.constant 0 : i32
    %c0_i32_1 = arith.constant 0 : i32
    return %c0_i32, %c0_i32_0 : i32, i32
  }
  func.func @transform_9(%arg0: i32) -> (i32, i32) {
    %c0_i32 = arith.constant 0 : i32
    %c0_i32_0 = arith.constant 0 : i32
    %c0_i32_1 = arith.constant 0 : i32
    return %c0_i32, %c0_i32_0 : i32, i32
  }
  func.func @transform_10(%arg0: i32) -> (i32, i32) {
    %c0_i32 = arith.constant 0 : i32
    %c0_i32_0 = arith.constant 0 : i32
    return %arg0, %c0_i32 : i32, i32
  }
}

</mosaic_0001>

<llo_original>
// kernel: tile.15
$region0: #{tile.15}
  #allocation0 [shape = 's32[1]{0}', space=sflag, size = 0x4, scoped, tag = 'scoped memory for tile.15']
  %s0 = inlined_call_operand.vmem [shape: f32[16], index: 0, kind: input, shape index: {}]
  %s1 = inlined_call_operand.vmem [shape: f32[8,16], index: 1, kind: output, shape index: {}]
  // Predicated region
  $region2: #{tile.15} parent=0 // pred_check
    _
  $region3: #{tile.15} parent=0 // pred_check_branch
    %3 = sbr.rel (0) target = $region5
  $region4: #{tile.15} parent=0 // pred_region
    _
  $region5: #{tile.15} parent=0 // pred_fallthru
    _
  %v4 = vld [vmem:[%s0] ss:$0 sm:$0xff]
  %5 = vst [vmem:[%s1] sm:$0xff] %v4

// kernel: tile.19
$region0: #{tile.19}
  #allocation0 [shape = 's32[1]{0}', space=sflag, size = 0x4, scoped, tag = 'scoped memory for tile.19']
  %s0 = inlined_call_operand.vmem [shape: f32[32], index: 0, kind: input, shape index: {}]
  %s1 = inlined_call_operand.vmem [shape: f32[4,32], index: 1, kind: output, shape index: {}]
  // Predicated region
  $region2: #{tile.19} parent=0 // pred_check
    _
  $region3: #{tile.19} parent=0 // pred_check_branch
    %3 = sbr.rel (0) target = $region5
  $region4: #{tile.19} parent=0 // pred_region
    _
  $region5: #{tile.19} parent=0 // pred_fallthru
    _
  %v4 = vld [vmem:[%s0] ss:$0 sm:$0xff]
  %5 = vst [vmem:[%s1] sm:$0xf] %v4

// kernel: cnn_forward.1
$region0: #{cnn_forward.1}
  #allocation0 [shape = 'u32[]', space=smem, size = 0x4, offset = 0x4, fixed_abs, tag = 'smem constant byte address 0x4 - core index']
  #allocation1 [shape = 'u32[72,128]{1,0:T(1,128)}', space=vmem, size = 0x9000, scoped, tag = 'internal scratch']
  #allocation2 [shape = 'f32[256,128]{1,0:T(8,128)}', space=vmem, size = 0x20000, scoped, tag = 'scratch operand']
  #allocation3 [shape = 'f32[130,64]{1,0:T(8,128)}', space=vmem, size = 0x11000, scoped, tag = 'scratch operand']
  #allocation4 [shape = 'f32[128,128]{1,0:T(8,128)}', space=vmem, size = 0x10000, scoped, tag = 'scratch operand']
  #allocation5 [shape = 'f32[64,64]{1,0:T(8,128)}', space=vmem, size = 0x8000, scoped, tag = 'scratch operand']
  #allocation6 [shape = 'f32[1,1]{1,0:T(1,128)S(1)}', space=vmem, size = 0x200, scoped, tag = 'scoped memory for cnn_forward.1']
  %s0 = inlined_call_operand.vmem [shape: bf16[256,30], index: 0, kind: input, shape index: {}]
  %s1 = inlined_call_operand.vmem [shape: bf16[30,128], index: 1, kind: input, shape index: {}]
  %s2 = inlined_call_operand.vmem [shape: f32[1,128], index: 2, kind: input, shape index: {}]
  %s3 = inlined_call_operand.vmem [shape: bf16[3,64,128], index: 3, kind: input, shape index: {}]
  %s4 = inlined_call_operand.vmem [shape: f32[1,128], index: 4, kind: input, shape index: {}]
  %s5 = inlined_call_operand.vmem [shape: f32[2,128,64], index: 5, kind: input, shape index: {}]
  %s6 = inlined_call_operand.vmem [shape: bf16[4,64,64], index: 6, kind: input, shape index: {}]
  %s7 = inlined_call_operand.vmem [shape: f32[1,64], index: 7, kind: input, shape index: {}]
  %s8 = inlined_call_operand.vmem [shape: f32[1,64], index: 8, kind: input, shape index: {}]
  %s9 = inlined_call_operand.<no memory space> [shape: f32[1,1], index: 9, kind: input, shape index: {}]
  %s10 = inlined_call_operand.vmem [shape: f32[16,1], index: 10, kind: output, shape index: {}]
  %s11 = sld [smem:[#allocation0]]
  $region50: #{cnn_forward.1} parent=0
    _
  %s13 = ssub.s32 1, %s11
  %s14 = scalar_select 0, %s13, %s11
  %v15 = vstv %s9
  %16 = vst [vmem:[#allocation6] sm:$0x1] %v15
  // Predicated region
  $region2: #{cnn_forward.1} parent=0 // pred_check
    _
  $region3: #{cnn_forward.1} parent=0 // pred_check_branch
    %18 = sbr.rel (0) target = $region5
  $region4: #{cnn_forward.1} parent=0 // pred_region
    _
  $region5: #{cnn_forward.1} parent=0 // pred_fallthru
    _
  // Predicated region
  $region6: #{cnn_forward.1} parent=0 // pred_check
    _
  $region7: #{cnn_forward.1} parent=0 // pred_check_branch
    %20 = sbr.rel (0) target = $region9
  $region8: #{cnn_forward.1} parent=0 // pred_region
    _
  $region9: #{cnn_forward.1} parent=0 // pred_fallthru
    _
  // Predicated region
  $region10: #{cnn_forward.1} parent=0 // pred_check
    _
  $region11: #{cnn_forward.1} parent=0 // pred_check_branch
    %22 = sbr.rel (0) target = $region13
  $region12: #{cnn_forward.1} parent=0 // pred_region
    _
  $region13: #{cnn_forward.1} parent=0 // pred_fallthru
    _
  // Predicated region
  $region14: #{cnn_forward.1} parent=0 // pred_check
    _
  $region15: #{cnn_forward.1} parent=0 // pred_check_branch
    %24 = sbr.rel (0) target = $region17
  $region16: #{cnn_forward.1} parent=0 // pred_region
    _
  $region17: #{cnn_forward.1} parent=0 // pred_fallthru
    _
  // Predicated region
  $region18: #{cnn_forward.1} parent=0 // pred_check
    _
  $region19: #{cnn_forward.1} parent=0 // pred_check_branch
    %26 = sbr.rel (0) target = $region21
  $region20: #{cnn_forward.1} parent=0 // pred_region
    _
  $region21: #{cnn_forward.1} parent=0 // pred_fallthru
    _
  // Predicated region
  $region22: #{cnn_forward.1} parent=0 // pred_check
    _
  $region23: #{cnn_forward.1} parent=0 // pred_check_branch
    %28 = sbr.rel (0) target = $region25
  $region24: #{cnn_forward.1} parent=0 // pred_region
    _
  $region25: #{cnn_forward.1} parent=0 // pred_fallthru
    _
  // Predicated region
  $region26: #{cnn_forward.1} parent=0 // pred_check
    _
  $region27: #{cnn_forward.1} parent=0 // pred_check_branch
    %30 = sbr.rel (0) target = $region29
  $region28: #{cnn_forward.1} parent=0 // pred_region
    _
  $region29: #{cnn_forward.1} parent=0 // pred_fallthru
    _
  // Predicated region
  $region30: #{cnn_forward.1} parent=0 // pred_check
    _
  $region31: #{cnn_forward.1} parent=0 // pred_check_branch
    %32 = sbr.rel (0) target = $region33
  $region32: #{cnn_forward.1} parent=0 // pred_region
    _
  $region33: #{cnn_forward.1} parent=0 // pred_fallthru
    _
  // Predicated region
  $region34: #{cnn_forward.1} parent=0 // pred_check
    _
  $region35: #{cnn_forward.1} parent=0 // pred_check_branch
    %34 = sbr.rel (0) target = $region37
  $region36: #{cnn_forward.1} parent=0 // pred_region
    _
  $region37: #{cnn_forward.1} parent=0 // pred_fallthru
    _
  // Predicated region
  $region38: #{cnn_forward.1} parent=0 // pred_check
    _
  $region39: #{cnn_forward.1} parent=0 // pred_check_branch
    %36 = sbr.rel (0) target = $region41
  $region40: #{cnn_forward.1} parent=0 // pred_region
    _
  $region41: #{cnn_forward.1} parent=0 // pred_fallthru
    _
  %v38 = vld [vmem:[%s0] sm:$0xf]
  %v39 = vld [vmem:[%s0 + $0x4] sm:$0xf]
  %v40 = vld [vmem:[%s0 + $0x8] sm:$0xf]
  %v41 = vld [vmem:[%s0 + $0xc] sm:$0xf]
  %v42 = vld [vmem:[%s0 + $0x10] sm:$0xf]
  %v43 = vld [vmem:[%s0 + $0x14] sm:$0xf]
  %v44 = vld [vmem:[%s0 + $0x18] sm:$0xf]
  %v45 = vld [vmem:[%s0 + $0x1c] sm:$0xf]
  %v46 = vld [vmem:[%s0 + $0x20] sm:$0xf]
  %v47 = vld [vmem:[%s0 + $0x24] sm:$0xf]
  %v48 = vld [vmem:[%s0 + $0x28] sm:$0xf]
  %v49 = vld [vmem:[%s0 + $0x2c] sm:$0xf]
  %v50 = vld [vmem:[%s0 + $0x30] sm:$0xf]
  %v51 = vld [vmem:[%s0 + $0x34] sm:$0xf]
  %v52 = vld [vmem:[%s0 + $0x38] sm:$0xf]
  %v53 = vld [vmem:[%s0 + $0x3c] sm:$0xf]
  %v54 = vld [vmem:[%s0 + $0x40] sm:$0xf]
  %v55 = vld [vmem:[%s0 + $0x44] sm:$0xf]
  %v56 = vld [vmem:[%s0 + $0x48] sm:$0xf]
  %v57 = vld [vmem:[%s0 + $0x4c] sm:$0xf]
  %v58 = vld [vmem:[%s0 + $0x50] sm:$0xf]
  %v59 = vld [vmem:[%s0 + $0x54] sm:$0xf]
  %v60 = vld [vmem:[%s0 + $0x58] sm:$0xf]
  %v61 = vld [vmem:[%s0 + $0x5c] sm:$0xf]
  %v62 = vld [vmem:[%s0 + $0x60] sm:$0xf]
  %v63 = vld [vmem:[%s0 + $0x64] sm:$0xf]
  %v64 = vld [vmem:[%s0 + $0x68] sm:$0xf]
  %v65 = vld [vmem:[%s0 + $0x6c] sm:$0xf]
  %v66 = vld [vmem:[%s0 + $0x70] sm:$0xf]
  %v67 = vld [vmem:[%s0 + $0x74] sm:$0xf]
  %v68 = vld [vmem:[%s0 + $0x78] sm:$0xf]
  %v69 = vld [vmem:[%s0 + $0x7c] sm:$0xf]
  %v70 = vld [vmem:[%s1] sm:$0xf]
  %v71 = vld [vmem:[%s1 + $0x4] sm:$0xf]
  %v72 = vld [vmem:[%s1 + $0x8] sm:$0xf]
  %v73 = vld [vmem:[%s1 + $0xc] sm:$0x7]
  %v74 = vld [vmem:[%s2] sm:$0x1]
  %v76 = vperm.slane %v74, 0
  %v110 = vunpack.c.l.b16 %v38
  %v111 = vunpack.c.l.b16 %v39
  %v112 = vunpack.c.l.b16 %v40
  %v113 = vunpack.c.l.b16 %v41
  %v114 = vunpack.c.l.b16 %v42
  %v115 = vunpack.c.l.b16 %v43
  %v116 = vunpack.c.l.b16 %v44
  %v117 = vunpack.c.l.b16 %v45
  %v118 = vunpack.c.l.b16 %v46
  %v119 = vunpack.c.l.b16 %v47
  %v120 = vunpack.c.l.b16 %v48
  %v121 = vunpack.c.l.b16 %v49
  %v122 = vunpack.c.l.b16 %v50
  %v123 = vunpack.c.l.b16 %v51
  %v124 = vunpack.c.l.b16 %v52
  %v125 = vunpack.c.l.b16 %v53
  %v126 = vunpack.c.l.b16 %v54
  %v127 = vunpack.c.l.b16 %v55
  %v128 = vunpack.c.l.b16 %v56
  %v129 = vunpack.c.l.b16 %v57
  %v130 = vunpack.c.l.b16 %v58
  %v131 = vunpack.c.l.b16 %v59
  %v132 = vunpack.c.l.b16 %v60
  %v133 = vunpack.c.l.b16 %v61
  %v134 = vunpack.c.l.b16 %v62
  %v135 = vunpack.c.l.b16 %v63
  %v136 = vunpack.c.l.b16 %v64
  %v137 = vunpack.c.l.b16 %v65
  %v138 = vunpack.c.l.b16 %v66
  %v139 = vunpack.c.l.b16 %v67
  %v140 = vunpack.c.l.b16 %v68
  %v141 = vunpack.c.l.b16 %v69
  %v142 = vpack.c.b16 %v111, %v110
  %v143 = vpack.c.b16 %v113, %v112
  %v144 = vpack.c.b16 %v115, %v114
  %v145 = vpack.c.b16 %v117, %v116
  %v146 = vpack.c.b16 %v119, %v118
  %v147 = vpack.c.b16 %v121, %v120
  %v148 = vpack.c.b16 %v123, %v122
  %v149 = vpack.c.b16 %v125, %v124
  %v150 = vpack.c.b16 %v127, %v126
  %v151 = vpack.c.b16 %v129, %v128
  %v152 = vpack.c.b16 %v131, %v130
  %v153 = vpack.c.b16 %v133, %v132
  %v154 = vpack.c.b16 %v135, %v134
  %v155 = vpack.c.b16 %v137, %v136
  %v156 = vpack.c.b16 %v139, %v138
  %v157 = vpack.c.b16 %v141, %v140
  %v162 = vunpack.c.l.b16 %v70
  %v163 = vunpack.c.l.b16 %v71
  %v164 = vunpack.c.l.b16 %v72
  %v165 = vunpack.c.l.b16 %v73
  %v166 = vpack.c.b16 %v163, %v162
  %v167 = vpack.c.b16 %v165, %v164
  %vm169 = vcmask 244736
  %v171 = vsel %vm169, %v142, 0
  %v174 = vsel %vm169, %v143, 0
  %v177 = vsel %vm169, %v144, 0
  %v180 = vsel %vm169, %v145, 0
  %v183 = vsel %vm169, %v146, 0
  %v186 = vsel %vm169, %v147, 0
  %v189 = vsel %vm169, %v148, 0
  %v192 = vsel %vm169, %v149, 0
  %v195 = vsel %vm169, %v150, 0
  %v198 = vsel %vm169, %v151, 0
  %v201 = vsel %vm169, %v152, 0
  %v204 = vsel %vm169, %v153, 0
  %v207 = vsel %vm169, %v154, 0
  %v210 = vsel %vm169, %v155, 0
  %v213 = vsel %vm169, %v156, 0
  %v216 = vsel %vm169, %v157, 0
  %vm218 = vcmask 1046528
  %v220 = vsel %vm218, %v167, 0
  %222 = vmatpush.bf16.msra.mxu0 0
  %223 = vmatpush.bf16.msra.mxu0 0
  %224 = vmatpush.bf16.msra.mxu0 0
  %225 = vmatpush.bf16.msra.mxu0 0
  %226 = vmatpush.bf16.msra.mxu0 0
  %227 = vmatpush.bf16.msra.mxu0 0
  %228 = vmatpush.bf16.msra.mxu0 %v220
  %229 = vmatpush.bf16.msra.mxu0 %v166
  %230 = vmatmul.bf16.gmra.mxu0 %v171
  %v231 = vpop.f32.mrf.mxu0
  %v232 = vadd.f32 %v76, %v231
  %v233 = vpop.f32.mrf.mxu0
  %v234 = vadd.f32 %v76, %v233
  %235 = vmatmul.bf16.gmra.mxu0 %v174
  %v236 = vpop.f32.mrf.mxu0
  %v237 = vadd.f32 %v76, %v236
  %v238 = vpop.f32.mrf.mxu0
  %v239 = vadd.f32 %v76, %v238
  %240 = vmatmul.bf16.gmra.mxu0 %v177
  %v241 = vpop.f32.mrf.mxu0
  %v242 = vadd.f32 %v76, %v241
  %v243 = vpop.f32.mrf.mxu0
  %v244 = vadd.f32 %v76, %v243
  %245 = vmatmul.bf16.gmra.mxu0 %v180
  %v246 = vpop.f32.mrf.mxu0
  %v247 = vadd.f32 %v76, %v246
  %v248 = vpop.f32.mrf.mxu0
  %v249 = vadd.f32 %v76, %v248
  %250 = vmatmul.bf16.gmra.mxu0 %v183
  %v251 = vpop.f32.mrf.mxu0
  %v252 = vadd.f32 %v76, %v251
  %v253 = vpop.f32.mrf.mxu0
  %v254 = vadd.f32 %v76, %v253
  %255 = vmatmul.bf16.gmra.mxu0 %v186
  %v256 = vpop.f32.mrf.mxu0
  %v257 = vadd.f32 %v76, %v256
  %v258 = vpop.f32.mrf.mxu0
  %v259 = vadd.f32 %v76, %v258
  %260 = vmatmul.bf16.gmra.mxu0 %v189
  %v261 = vpop.f32.mrf.mxu0
  %v262 = vadd.f32 %v76, %v261
  %v263 = vpop.f32.mrf.mxu0
  %v264 = vadd.f32 %v76, %v263
  %265 = vmatmul.bf16.gmra.mxu0 %v192
  %v266 = vpop.f32.mrf.mxu0
  %v267 = vadd.f32 %v76, %v266
  %v268 = vpop.f32.mrf.mxu0
  %v269 = vadd.f32 %v76, %v268
  %270 = vmatmul.bf16.gmra.mxu0 %v195
  %v271 = vpop.f32.mrf.mxu0
  %v272 = vadd.f32 %v76, %v271
  %v273 = vpop.f32.mrf.mxu0
  %v274 = vadd.f32 %v76, %v273
  %275 = vmatmul.bf16.gmra.mxu0 %v198
  %v276 = vpop.f32.mrf.mxu0
  %v277 = vadd.f32 %v76, %v276
  %v278 = vpop.f32.mrf.mxu0
  %v279 = vadd.f32 %v76, %v278
  %280 = vmatmul.bf16.gmra.mxu0 %v201
  %v281 = vpop.f32.mrf.mxu0
  %v282 = vadd.f32 %v76, %v281
  %v283 = vpop.f32.mrf.mxu0
  %v284 = vadd.f32 %v76, %v283
  %285 = vmatmul.bf16.gmra.mxu0 %v204
  %v286 = vpop.f32.mrf.mxu0
  %v287 = vadd.f32 %v76, %v286
  %v288 = vpop.f32.mrf.mxu0
  %v289 = vadd.f32 %v76, %v288
  %290 = vmatmul.bf16.gmra.mxu0 %v207
  %v291 = vpop.f32.mrf.mxu0
  %v292 = vadd.f32 %v76, %v291
  %v293 = vpop.f32.mrf.mxu0
  %v294 = vadd.f32 %v76, %v293
  %295 = vmatmul.bf16.gmra.mxu0 %v210
  %v296 = vpop.f32.mrf.mxu0
  %v297 = vadd.f32 %v76, %v296
  %v298 = vpop.f32.mrf.mxu0
  %v299 = vadd.f32 %v76, %v298
  %300 = vmatmul.bf16.gmra.mxu0 %v213
  %v301 = vpop.f32.mrf.mxu0
  %v302 = vadd.f32 %v76, %v301
  %v303 = vpop.f32.mrf.mxu0
  %v304 = vadd.f32 %v76, %v303
  %305 = vmatmul.bf16.gmra.mxu0 %v216
  %v306 = vpop.f32.mrf.mxu0
  %v307 = vadd.f32 %v76, %v306
  %v308 = vpop.f32.mrf.mxu0
  %v309 = vadd.f32 %v76, %v308
  %310 = vdwg.mxu0
  %v311 = vmax.f32 %v232, 0.0
  %v312 = vmax.f32 %v234, 0.0
  %v313 = vmax.f32 %v237, 0.0
  %v314 = vmax.f32 %v239, 0.0
  %v315 = vmax.f32 %v242, 0.0
  %v316 = vmax.f32 %v244, 0.0
  %v317 = vmax.f32 %v247, 0.0
  %v318 = vmax.f32 %v249, 0.0
  %v319 = vmax.f32 %v252, 0.0
  %v320 = vmax.f32 %v254, 0.0
  %v321 = vmax.f32 %v257, 0.0
  %v322 = vmax.f32 %v259, 0.0
  %v323 = vmax.f32 %v262, 0.0
  %v324 = vmax.f32 %v264, 0.0
  %v325 = vmax.f32 %v267, 0.0
  %v326 = vmax.f32 %v269, 0.0
  %v327 = vmax.f32 %v272, 0.0
  %v328 = vmax.f32 %v274, 0.0
  %v329 = vmax.f32 %v277, 0.0
  %v330 = vmax.f32 %v279, 0.0
  %v331 = vmax.f32 %v282, 0.0
  %v332 = vmax.f32 %v284, 0.0
  %v333 = vmax.f32 %v287, 0.0
  %v334 = vmax.f32 %v289, 0.0
  %v335 = vmax.f32 %v292, 0.0
  %v336 = vmax.f32 %v294, 0.0
  %v337 = vmax.f32 %v297, 0.0
  %v338 = vmax.f32 %v299, 0.0
  %v339 = vmax.f32 %v302, 0.0
  %v340 = vmax.f32 %v304, 0.0
  %v341 = vmax.f32 %v307, 0.0
  %v342 = vmax.f32 %v309, 0.0
  %343 = vst [vmem:[#allocation2] sm:$0xff] %v311
  %344 = vst [vmem:[#allocation2 + $0x8] sm:$0xff] %v312
  %345 = vst [vmem:[#allocation2 + $0x10] sm:$0xff] %v313
  %346 = vst [vmem:[#allocation2 + $0x18] sm:$0xff] %v314
  %347 = vst [vmem:[#allocation2 + $0x20] sm:$0xff] %v315
  %348 = vst [vmem:[#allocation2 + $0x28] sm:$0xff] %v316
  %349 = vst [vmem:[#allocation2 + $0x30] sm:$0xff] %v317
  %350 = vst [vmem:[#allocation2 + $0x38] sm:$0xff] %v318
  %351 = vst [vmem:[#allocation2 + $0x40] sm:$0xff] %v319
  %352 = vst [vmem:[#allocation2 + $0x48] sm:$0xff] %v320
  %353 = vst [vmem:[#allocation2 + $0x50] sm:$0xff] %v321
  %354 = vst [vmem:[#allocation2 + $0x58] sm:$0xff] %v322
  %355 = vst [vmem:[#allocation2 + $0x60] sm:$0xff] %v323
  %356 = vst [vmem:[#allocation2 + $0x68] sm:$0xff] %v324
  %357 = vst [vmem:[#allocation2 + $0x70] sm:$0xff] %v325
  %358 = vst [vmem:[#allocation2 + $0x78] sm:$0xff] %v326
  %359 = vst [vmem:[#allocation2 + $0x80] sm:$0xff] %v327
  %360 = vst [vmem:[#allocation2 + $0x88] sm:$0xff] %v328
  %361 = vst [vmem:[#allocation2 + $0x90] sm:$0xff] %v329
  %362 = vst [vmem:[#allocation2 + $0x98] sm:$0xff] %v330
  %363 = vst [vmem:[#allocation2 + $0xa0] sm:$0xff] %v331
  %364 = vst [vmem:[#allocation2 + $0xa8] sm:$0xff] %v332
  %365 = vst [vmem:[#allocation2 + $0xb0] sm:$0xff] %v333
  %366 = vst [vmem:[#allocation2 + $0xb8] sm:$0xff] %v334
  %367 = vst [vmem:[#allocation2 + $0xc0] sm:$0xff] %v335
  %368 = vst [vmem:[#allocation2 + $0xc8] sm:$0xff] %v336
  %369 = vst [vmem:[#allocation2 + $0xd0] sm:$0xff] %v337
  %370 = vst [vmem:[#allocation2 + $0xd8] sm:$0xff] %v338
  %371 = vst [vmem:[#allocation2 + $0xe0] sm:$0xff] %v339
  %372 = vst [vmem:[#allocation2 + $0xe8] sm:$0xff] %v340
  %373 = vst [vmem:[#allocation2 + $0xf0] sm:$0xff] %v341
  %374 = vst [vmem:[#allocation2 + $0xf8] sm:$0xff] %v342
  %v375 = vld [vmem:[#allocation2] ss:$2 sm:$0xff]
  %s376 = scalar_lea.vmem [#allocation2], 16
  %v377 = vld [vmem:[%s376] ss:$2 sm:$0xff]
  %s378 = scalar_lea.vmem [#allocation2], 32
  %v379 = vld [vmem:[%s378] ss:$2 sm:$0xff]
  %s380 = scalar_lea.vmem [#allocation2], 48
  %v381 = vld [vmem:[%s380] ss:$2 sm:$0xff]
  %s382 = scalar_lea.vmem [#allocation2], 64
  %v383 = vld [vmem:[%s382] ss:$2 sm:$0xff]
  %s384 = scalar_lea.vmem [#allocation2], 80
  %v385 = vld [vmem:[%s384] ss:$2 sm:$0xff]
  %s386 = scalar_lea.vmem [#allocation2], 96
  %v387 = vld [vmem:[%s386] ss:$2 sm:$0xff]
  %s388 = scalar_lea.vmem [#allocation2], 112
  %v389 = vld [vmem:[%s388] ss:$2 sm:$0xff]
  %s390 = scalar_lea.vmem [#allocation2], 128
  %v391 = vld [vmem:[%s390] ss:$2 sm:$0xff]
  %s392 = scalar_lea.vmem [#allocation2], 144
  %v393 = vld [vmem:[%s392] ss:$2 sm:$0xff]
  %s394 = scalar_lea.vmem [#allocation2], 160
  %v395 = vld [vmem:[%s394] ss:$2 sm:$0xff]
  %s396 = scalar_lea.vmem [#allocation2], 176
  %v397 = vld [vmem:[%s396] ss:$2 sm:$0xff]
  %s398 = scalar_lea.vmem [#allocation2], 192
  %v399 = vld [vmem:[%s398] ss:$2 sm:$0xff]
  %s400 = scalar_lea.vmem [#allocation2], 208
  %v401 = vld [vmem:[%s400] ss:$2 sm:$0xff]
  %s402 = scalar_lea.vmem [#allocation2], 224
  %v403 = vld [vmem:[%s402] ss:$2 sm:$0xff]
  %s404 = scalar_lea.vmem [#allocation2], 240
  %v405 = vld [vmem:[%s404] ss:$2 sm:$0xff]
  %s406 = scalar_lea.vmem [#allocation2], 1
  %v407 = vld [vmem:[%s406] ss:$2 sm:$0xff]
  %s408 = scalar_lea.vmem [#allocation2], 17
  %v409 = vld [vmem:[%s408] ss:$2 sm:$0xff]
  %s410 = scalar_lea.vmem [#allocation2], 33
  %v411 = vld [vmem:[%s410] ss:$2 sm:$0xff]
  %s412 = scalar_lea.vmem [#allocation2], 49
  %v413 = vld [vmem:[%s412] ss:$2 sm:$0xff]
  %s414 = scalar_lea.vmem [#allocation2], 65
  %v415 = vld [vmem:[%s414] ss:$2 sm:$0xff]
  %s416 = scalar_lea.vmem [#allocation2], 81
  %v417 = vld [vmem:[%s416] ss:$2 sm:$0xff]
  %s418 = scalar_lea.vmem [#allocation2], 97
  %v419 = vld [vmem:[%s418] ss:$2 sm:$0xff]
  %s420 = scalar_lea.vmem [#allocation2], 113
  %v421 = vld [vmem:[%s420] ss:$2 sm:$0xff]
  %s422 = scalar_lea.vmem [#allocation2], 129
  %v423 = vld [vmem:[%s422] ss:$2 sm:$0xff]
  %s424 = scalar_lea.vmem [#allocation2], 145
  %v425 = vld [vmem:[%s424] ss:$2 sm:$0xff]
  %s426 = scalar_lea.vmem [#allocation2], 161
  %v427 = vld [vmem:[%s426] ss:$2 sm:$0xff]
  %s428 = scalar_lea.vmem [#allocation2], 177
  %v429 = vld [vmem:[%s428] ss:$2 sm:$0xff]
  %s430 = scalar_lea.vmem [#allocation2], 193
  %v431 = vld [vmem:[%s430] ss:$2 sm:$0xff]
  %s432 = scalar_lea.vmem [#allocation2], 209
  %v433 = vld [vmem:[%s432] ss:$2 sm:$0xff]
  %s434 = scalar_lea.vmem [#allocation2], 225
  %v435 = vld [vmem:[%s434] ss:$2 sm:$0xff]
  %s436 = scalar_lea.vmem [#allocation2], 241
  %v437 = vld [vmem:[%s436] ss:$2 sm:$0xff]
  %v438 = vmax.f32 %v375, %v407
  %v439 = vmax.f32 %v377, %v409
  %v440 = vmax.f32 %v379, %v411
  %v441 = vmax.f32 %v381, %v413
  %v442 = vmax.f32 %v383, %v415
  %v443 = vmax.f32 %v385, %v417
  %v444 = vmax.f32 %v387, %v419
  %v445 = vmax.f32 %v389, %v421
  %v446 = vmax.f32 %v391, %v423
  %v447 = vmax.f32 %v393, %v425
  %v448 = vmax.f32 %v395, %v427
  %v449 = vmax.f32 %v397, %v429
  %v450 = vmax.f32 %v399, %v431
  %v451 = vmax.f32 %v401, %v433
  %v452 = vmax.f32 %v403, %v435
  %v453 = vmax.f32 %v405, %v437
  %470 = vrot.lane.b32.xlu0 %v438, 64
  %v471 = vpop.permute.xlu0 %470
  %472 = vrot.lane.b32.xlu0 %v439, 64
  %v473 = vpop.permute.xlu0 %472
  %474 = vrot.lane.b32.xlu0 %v440, 64
  %v475 = vpop.permute.xlu0 %474
  %476 = vrot.lane.b32.xlu0 %v441, 64
  %v477 = vpop.permute.xlu0 %476
  %478 = vrot.lane.b32.xlu0 %v442, 64
  %v479 = vpop.permute.xlu0 %478
  %480 = vrot.lane.b32.xlu0 %v443, 64
  %v481 = vpop.permute.xlu0 %480
  %482 = vrot.lane.b32.xlu0 %v444, 64
  %v483 = vpop.permute.xlu0 %482
  %484 = vrot.lane.b32.xlu0 %v445, 64
  %v485 = vpop.permute.xlu0 %484
  %486 = vrot.lane.b32.xlu0 %v446, 64
  %v487 = vpop.permute.xlu0 %486
  %488 = vrot.lane.b32.xlu0 %v447, 64
  %v489 = vpop.permute.xlu0 %488
  %490 = vrot.lane.b32.xlu0 %v448, 64
  %v491 = vpop.permute.xlu0 %490
  %492 = vrot.lane.b32.xlu0 %v449, 64
  %v493 = vpop.permute.xlu0 %492
  %494 = vrot.lane.b32.xlu0 %v450, 64
  %v495 = vpop.permute.xlu0 %494
  %496 = vrot.lane.b32.xlu0 %v451, 64
  %v497 = vpop.permute.xlu0 %496
  %498 = vrot.lane.b32.xlu0 %v452, 64
  %v499 = vpop.permute.xlu0 %498
  %500 = vrot.lane.b32.xlu0 %v453, 64
  %v501 = vpop.permute.xlu0 %500
  %v518 = vmax.f32 %v438, %v471
  %v519 = vmax.f32 %v439, %v473
  %v520 = vmax.f32 %v440, %v475
  %v521 = vmax.f32 %v441, %v477
  %v522 = vmax.f32 %v442, %v479
  %v523 = vmax.f32 %v443, %v481
  %v524 = vmax.f32 %v444, %v483
  %v525 = vmax.f32 %v445, %v485
  %v526 = vmax.f32 %v446, %v487
  %v527 = vmax.f32 %v447, %v489
  %v528 = vmax.f32 %v448, %v491
  %v529 = vmax.f32 %v449, %v493
  %v530 = vmax.f32 %v450, %v495
  %v531 = vmax.f32 %v451, %v497
  %v532 = vmax.f32 %v452, %v499
  %v533 = vmax.f32 %v453, %v501
  %vm534 = vcmask 516096
  %535 = vst.msk [vmem:[#allocation3] sm:$0x1] %vm534, 0.0
  %536 = vst.msk [vmem:[#allocation3 + $0x81] sm:$0x1] %vm534, 0.0
  %vm537 = vcmask 523264
  %538 = vst.msk [vmem:[#allocation3 + $0x1] sm:$0xff] %vm537, %v518
  %539 = vst.msk [vmem:[#allocation3 + $0x9] sm:$0xff] %vm537, %v519
  %540 = vst.msk [vmem:[#allocation3 + $0x11] sm:$0xff] %vm537, %v520
  %541 = vst.msk [vmem:[#allocation3 + $0x19] sm:$0xff] %vm537, %v521
  %542 = vst.msk [vmem:[#allocation3 + $0x21] sm:$0xff] %vm537, %v522
  %543 = vst.msk [vmem:[#allocation3 + $0x29] sm:$0xff] %vm537, %v523
  %544 = vst.msk [vmem:[#allocation3 + $0x31] sm:$0xff] %vm537, %v524
  %545 = vst.msk [vmem:[#allocation3 + $0x39] sm:$0xff] %vm537, %v525
  %546 = vst.msk [vmem:[#allocation3 + $0x41] sm:$0xff] %vm537, %v526
  %547 = vst.msk [vmem:[#allocation3 + $0x49] sm:$0xff] %vm537, %v527
  %548 = vst.msk [vmem:[#allocation3 + $0x51] sm:$0xff] %vm537, %v528
  %549 = vst.msk [vmem:[#allocation3 + $0x59] sm:$0xff] %vm537, %v529
  %550 = vst.msk [vmem:[#allocation3 + $0x61] sm:$0xff] %vm537, %v530
  %551 = vst.msk [vmem:[#allocation3 + $0x69] sm:$0xff] %vm537, %v531
  %552 = vst.msk [vmem:[#allocation3 + $0x71] sm:$0xff] %vm537, %v532
  %553 = vst.msk [vmem:[#allocation3 + $0x79] sm:$0xff] %vm537, %v533
  %v554 = vld [vmem:[#allocation3] sm:$0xff]
  %v555 = vld [vmem:[#allocation3 + $0x8] sm:$0xff]
  %v556 = vld [vmem:[#allocation3 + $0x10] sm:$0xff]
  %v557 = vld [vmem:[#allocation3 + $0x18] sm:$0xff]
  %v558 = vld [vmem:[#allocation3 + $0x20] sm:$0xff]
  %v559 = vld [vmem:[#allocation3 + $0x28] sm:$0xff]
  %v560 = vld [vmem:[#allocation3 + $0x30] sm:$0xff]
  %v561 = vld [vmem:[#allocation3 + $0x38] sm:$0xff]
  %v562 = vld [vmem:[#allocation3 + $0x40] sm:$0xff]
  %v563 = vld [vmem:[#allocation3 + $0x48] sm:$0xff]
  %v564 = vld [vmem:[#allocation3 + $0x50] sm:$0xff]
  %v565 = vld [vmem:[#allocation3 + $0x58] sm:$0xff]
  %v566 = vld [vmem:[#allocation3 + $0x60] sm:$0xff]
  %v567 = vld [vmem:[#allocation3 + $0x68] sm:$0xff]
  %v568 = vld [vmem:[#allocation3 + $0x70] sm:$0xff]
  %v569 = vld [vmem:[#allocation3 + $0x78] sm:$0xff]
  %v570 = vld [vmem:[%s5] sm:$0xff]
  %v571 = vld [vmem:[%s5 + $0x8] sm:$0xff]
  %v572 = vld [vmem:[%s5 + $0x10] sm:$0xff]
  %v573 = vld [vmem:[%s5 + $0x18] sm:$0xff]
  %v574 = vld [vmem:[%s5 + $0x20] sm:$0xff]
  %v575 = vld [vmem:[%s5 + $0x28] sm:$0xff]
  %v576 = vld [vmem:[%s5 + $0x30] sm:$0xff]
  %v577 = vld [vmem:[%s5 + $0x38] sm:$0xff]
  %v578 = vld [vmem:[%s5 + $0x40] sm:$0xff]
  %v579 = vld [vmem:[%s5 + $0x48] sm:$0xff]
  %v580 = vld [vmem:[%s5 + $0x50] sm:$0xff]
  %v581 = vld [vmem:[%s5 + $0x58] sm:$0xff]
  %v582 = vld [vmem:[%s5 + $0x60] sm:$0xff]
  %v583 = vld [vmem:[%s5 + $0x68] sm:$0xff]
  %v584 = vld [vmem:[%s5 + $0x70] sm:$0xff]
  %v585 = vld [vmem:[%s5 + $0x78] sm:$0xff]
  %v586 = vmul.f32 %v554, %v570
  %v587 = vmul.f32 %v555, %v571
  %v588 = vmul.f32 %v556, %v572
  %v589 = vmul.f32 %v557, %v573
  %v590 = vmul.f32 %v558, %v574
  %v591 = vmul.f32 %v559, %v575
  %v592 = vmul.f32 %v560, %v576
  %v593 = vmul.f32 %v561, %v577
  %v594 = vmul.f32 %v562, %v578
  %v595 = vmul.f32 %v563, %v579
  %v596 = vmul.f32 %v564, %v580
  %v597 = vmul.f32 %v565, %v581
  %v598 = vmul.f32 %v566, %v582
  %v599 = vmul.f32 %v567, %v583
  %v600 = vmul.f32 %v568, %v584
  %v601 = vmul.f32 %v569, %v585
  %v602 = vpack.c.bf16 %v587, %v586
  %v603 = vpack.c.bf16 %v589, %v588
  %v604 = vpack.c.bf16 %v591, %v590
  %v605 = vpack.c.bf16 %v593, %v592
  %v606 = vpack.c.bf16 %v595, %v594
  %v607 = vpack.c.bf16 %v597, %v596
  %v608 = vpack.c.bf16 %v599, %v598
  %v609 = vpack.c.bf16 %v601, %v600
  %v610 = vld [vmem:[#allocation3 + $0x2] sm:$0xff]
  %v611 = vld [vmem:[#allocation3 + $0xa] sm:$0xff]
  %v612 = vld [vmem:[#allocation3 + $0x12] sm:$0xff]
  %v613 = vld [vmem:[#allocation3 + $0x1a] sm:$0xff]
  %v614 = vld [vmem:[#allocation3 + $0x22] sm:$0xff]
  %v615 = vld [vmem:[#allocation3 + $0x2a] sm:$0xff]
  %v616 = vld [vmem:[#allocation3 + $0x32] sm:$0xff]
  %v617 = vld [vmem:[#allocation3 + $0x3a] sm:$0xff]
  %v618 = vld [vmem:[#allocation3 + $0x42] sm:$0xff]
  %v619 = vld [vmem:[#allocation3 + $0x4a] sm:$0xff]
  %v620 = vld [vmem:[#allocation3 + $0x52] sm:$0xff]
  %v621 = vld [vmem:[#allocation3 + $0x5a] sm:$0xff]
  %v622 = vld [vmem:[#allocation3 + $0x62] sm:$0xff]
  %v623 = vld [vmem:[#allocation3 + $0x6a] sm:$0xff]
  %v624 = vld [vmem:[#allocation3 + $0x72] sm:$0xff]
  %v625 = vld [vmem:[#allocation3 + $0x7a] sm:$0xff]
  %s626 = scalar_lea.vmem %s5, 128
  %v627 = vld [vmem:[%s626] sm:$0xff]
  %v628 = vld [vmem:[%s626 + $0x8] sm:$0xff]
  %v629 = vld [vmem:[%s626 + $0x10] sm:$0xff]
  %v630 = vld [vmem:[%s626 + $0x18] sm:$0xff]
  %v631 = vld [vmem:[%s626 + $0x20] sm:$0xff]
  %v632 = vld [vmem:[%s626 + $0x28] sm:$0xff]
  %v633 = vld [vmem:[%s626 + $0x30] sm:$0xff]
  %v634 = vld [vmem:[%s626 + $0x38] sm:$0xff]
  %v635 = vld [vmem:[%s626 + $0x40] sm:$0xff]
  %v636 = vld [vmem:[%s626 + $0x48] sm:$0xff]
  %v637 = vld [vmem:[%s626 + $0x50] sm:$0xff]
  %v638 = vld [vmem:[%s626 + $0x58] sm:$0xff]
  %v639 = vld [vmem:[%s626 + $0x60] sm:$0xff]
  %v640 = vld [vmem:[%s626 + $0x68] sm:$0xff]
  %v641 = vld [vmem:[%s626 + $0x70] sm:$0xff]
  %v642 = vld [vmem:[%s626 + $0x78] sm:$0xff]
  %v643 = vmul.f32 %v610, %v627
  %v644 = vmul.f32 %v611, %v628
  %v645 = vmul.f32 %v612, %v629
  %v646 = vmul.f32 %v613, %v630
  %v647 = vmul.f32 %v614, %v631
  %v648 = vmul.f32 %v615, %v632
  %v649 = vmul.f32 %v616, %v633
  %v650 = vmul.f32 %v617, %v634
  %v651 = vmul.f32 %v618, %v635
  %v652 = vmul.f32 %v619, %v636
  %v653 = vmul.f32 %v620, %v637
  %v654 = vmul.f32 %v621, %v638
  %v655 = vmul.f32 %v622, %v639
  %v656 = vmul.f32 %v623, %v640
  %v657 = vmul.f32 %v624, %v641
  %v658 = vmul.f32 %v625, %v642
  %v659 = vpack.c.bf16 %v644, %v643
  %v660 = vpack.c.bf16 %v646, %v645
  %v661 = vpack.c.bf16 %v648, %v647
  %v662 = vpack.c.bf16 %v650, %v649
  %v663 = vpack.c.bf16 %v652, %v651
  %v664 = vpack.c.bf16 %v654, %v653
  %v665 = vpack.c.bf16 %v656, %v655
  %v666 = vpack.c.bf16 %v658, %v657
  %v667 = vld [vmem:[%s3] sm:$0xf]
  %v668 = vld [vmem:[%s3 + $0x4] sm:$0xf]
  %v669 = vld [vmem:[%s3 + $0x8] sm:$0xf]
  %v670 = vld [vmem:[%s3 + $0xc] sm:$0xf]
  %v671 = vld [vmem:[%s3 + $0x10] sm:$0xf]
  %v672 = vld [vmem:[%s3 + $0x14] sm:$0xf]
  %v673 = vld [vmem:[%s3 + $0x18] sm:$0xf]
  %v674 = vld [vmem:[%s3 + $0x1c] sm:$0xf]
  %v675 = vpack.c.bf16 %v519, %v518
  %v676 = vpack.c.bf16 %v521, %v520
  %v677 = vpack.c.bf16 %v523, %v522
  %v678 = vpack.c.bf16 %v525, %v524
  %v679 = vpack.c.bf16 %v527, %v526
  %v680 = vpack.c.bf16 %v529, %v528
  %v681 = vpack.c.bf16 %v531, %v530
  %v682 = vpack.c.bf16 %v533, %v532
  %s683 = scalar_lea.vmem %s3, 32
  %v684 = vld [vmem:[%s683] sm:$0xf]
  %v685 = vld [vmem:[%s683 + $0x4] sm:$0xf]
  %v686 = vld [vmem:[%s683 + $0x8] sm:$0xf]
  %v687 = vld [vmem:[%s683 + $0xc] sm:$0xf]
  %v688 = vld [vmem:[%s683 + $0x10] sm:$0xf]
  %v689 = vld [vmem:[%s683 + $0x14] sm:$0xf]
  %v690 = vld [vmem:[%s683 + $0x18] sm:$0xf]
  %v691 = vld [vmem:[%s683 + $0x1c] sm:$0xf]
  %v700 = vunpack.c.l.b16 %v684
  %v701 = vunpack.c.l.b16 %v685
  %v702 = vunpack.c.l.b16 %v686
  %v703 = vunpack.c.l.b16 %v687
  %v704 = vunpack.c.l.b16 %v688
  %v705 = vunpack.c.l.b16 %v689
  %v706 = vunpack.c.l.b16 %v690
  %v707 = vunpack.c.l.b16 %v691
  %v708 = vpack.c.b16 %v701, %v700
  %v709 = vpack.c.b16 %v703, %v702
  %v710 = vpack.c.b16 %v705, %v704
  %v711 = vpack.c.b16 %v707, %v706
  %v717 = vsel %vm537, %v675, 0
  %v720 = vsel %vm537, %v676, 0
  %v723 = vsel %vm537, %v677, 0
  %v726 = vsel %vm537, %v678, 0
  %v729 = vsel %vm537, %v679, 0
  %v732 = vsel %vm537, %v680, 0
  %v735 = vsel %vm537, %v681, 0
  %v738 = vsel %vm537, %v682, 0
  %740 = vmatpush.bf16.msra.mxu0 0
  %741 = vmatpush.bf16.msra.mxu0 0
  %742 = vmatpush.bf16.msra.mxu0 0
  %743 = vmatpush.bf16.msra.mxu0 0
  %744 = vmatpush.bf16.msra.mxu0 %v711
  %745 = vmatpush.bf16.msra.mxu0 %v710
  %746 = vmatpush.bf16.msra.mxu0 %v709
  %747 = vmatpush.bf16.msra.mxu0 %v708
  %748 = vmatmul.bf16.gmra.mxu0 %v717
  %v749 = vpop.f32.mrf.mxu0
  %v750 = vadd.f32 0.0, %v749
  %v751 = vpop.f32.mrf.mxu0
  %v752 = vadd.f32 0.0, %v751
  %753 = vmatmul.bf16.gmra.mxu0 %v720
  %v754 = vpop.f32.mrf.mxu0
  %v755 = vadd.f32 0.0, %v754
  %v756 = vpop.f32.mrf.mxu0
  %v757 = vadd.f32 0.0, %v756
  %758 = vmatmul.bf16.gmra.mxu0 %v723
  %v759 = vpop.f32.mrf.mxu0
  %v760 = vadd.f32 0.0, %v759
  %v761 = vpop.f32.mrf.mxu0
  %v762 = vadd.f32 0.0, %v761
  %763 = vmatmul.bf16.gmra.mxu0 %v726
  %v764 = vpop.f32.mrf.mxu0
  %v765 = vadd.f32 0.0, %v764
  %v766 = vpop.f32.mrf.mxu0
  %v767 = vadd.f32 0.0, %v766
  %768 = vmatmul.bf16.gmra.mxu0 %v729
  %v769 = vpop.f32.mrf.mxu0
  %v770 = vadd.f32 0.0, %v769
  %v771 = vpop.f32.mrf.mxu0
  %v772 = vadd.f32 0.0, %v771
  %773 = vmatmul.bf16.gmra.mxu0 %v732
  %v774 = vpop.f32.mrf.mxu0
  %v775 = vadd.f32 0.0, %v774
  %v776 = vpop.f32.mrf.mxu0
  %v777 = vadd.f32 0.0, %v776
  %778 = vmatmul.bf16.gmra.mxu0 %v735
  %v779 = vpop.f32.mrf.mxu0
  %v780 = vadd.f32 0.0, %v779
  %v781 = vpop.f32.mrf.mxu0
  %v782 = vadd.f32 0.0, %v781
  %783 = vmatmul.bf16.gmra.mxu0 %v738
  %v784 = vpop.f32.mrf.mxu0
  %v785 = vadd.f32 0.0, %v784
  %v786 = vpop.f32.mrf.mxu0
  %v787 = vadd.f32 0.0, %v786
  %788 = vdwg.mxu0
  %v797 = vunpack.c.l.b16 %v667
  %v798 = vunpack.c.l.b16 %v668
  %v799 = vunpack.c.l.b16 %v669
  %v800 = vunpack.c.l.b16 %v670
  %v801 = vunpack.c.l.b16 %v671
  %v802 = vunpack.c.l.b16 %v672
  %v803 = vunpack.c.l.b16 %v673
  %v804 = vunpack.c.l.b16 %v674
  %v805 = vpack.c.b16 %v798, %v797
  %v806 = vpack.c.b16 %v800, %v799
  %v807 = vpack.c.b16 %v802, %v801
  %v808 = vpack.c.b16 %v804, %v803
  %v814 = vsel %vm537, %v602, 0
  %v817 = vsel %vm537, %v603, 0
  %v820 = vsel %vm537, %v604, 0
  %v823 = vsel %vm537, %v605, 0
  %v826 = vsel %vm537, %v606, 0
  %v829 = vsel %vm537, %v607, 0
  %v832 = vsel %vm537, %v608, 0
  %v835 = vsel %vm537, %v609, 0
  %837 = vmatpush.bf16.msra.mxu0 0
  %838 = vmatpush.bf16.msra.mxu0 0
  %839 = vmatpush.bf16.msra.mxu0 0
  %840 = vmatpush.bf16.msra.mxu0 0
  %841 = vmatpush.bf16.msra.mxu0 %v808
  %842 = vmatpush.bf16.msra.mxu0 %v807
  %843 = vmatpush.bf16.msra.mxu0 %v806
  %844 = vmatpush.bf16.msra.mxu0 %v805
  %845 = vmatmul.bf16.gmra.mxu0 %v814
  %v846 = vpop.f32.mrf.mxu0
  %v847 = vadd.f32 %v750, %v846
  %v848 = vpop.f32.mrf.mxu0
  %v849 = vadd.f32 %v752, %v848
  %850 = vmatmul.bf16.gmra.mxu0 %v817
  %v851 = vpop.f32.mrf.mxu0
  %v852 = vadd.f32 %v755, %v851
  %v853 = vpop.f32.mrf.mxu0
  %v854 = vadd.f32 %v757, %v853
  %855 = vmatmul.bf16.gmra.mxu0 %v820
  %v856 = vpop.f32.mrf.mxu0
  %v857 = vadd.f32 %v760, %v856
  %v858 = vpop.f32.mrf.mxu0
  %v859 = vadd.f32 %v762, %v858
  %860 = vmatmul.bf16.gmra.mxu0 %v823
  %v861 = vpop.f32.mrf.mxu0
  %v862 = vadd.f32 %v765, %v861
  %v863 = vpop.f32.mrf.mxu0
  %v864 = vadd.f32 %v767, %v863
  %865 = vmatmul.bf16.gmra.mxu0 %v826
  %v866 = vpop.f32.mrf.mxu0
  %v867 = vadd.f32 %v770, %v866
  %v868 = vpop.f32.mrf.mxu0
  %v869 = vadd.f32 %v772, %v868
  %870 = vmatmul.bf16.gmra.mxu0 %v829
  %v871 = vpop.f32.mrf.mxu0
  %v872 = vadd.f32 %v775, %v871
  %v873 = vpop.f32.mrf.mxu0
  %v874 = vadd.f32 %v777, %v873
  %875 = vmatmul.bf16.gmra.mxu0 %v832
  %v876 = vpop.f32.mrf.mxu0
  %v877 = vadd.f32 %v780, %v876
  %v878 = vpop.f32.mrf.mxu0
  %v879 = vadd.f32 %v782, %v878
  %880 = vmatmul.bf16.gmra.mxu0 %v835
  %v881 = vpop.f32.mrf.mxu0
  %v882 = vadd.f32 %v785, %v881
  %v883 = vpop.f32.mrf.mxu0
  %v884 = vadd.f32 %v787, %v883
  %885 = vdwg.mxu0
  %s886 = scalar_lea.vmem %s3, 64
  %v887 = vld [vmem:[%s886] sm:$0xf]
  %v888 = vld [vmem:[%s886 + $0x4] sm:$0xf]
  %v889 = vld [vmem:[%s886 + $0x8] sm:$0xf]
  %v890 = vld [vmem:[%s886 + $0xc] sm:$0xf]
  %v891 = vld [vmem:[%s886 + $0x10] sm:$0xf]
  %v892 = vld [vmem:[%s886 + $0x14] sm:$0xf]
  %v893 = vld [vmem:[%s886 + $0x18] sm:$0xf]
  %v894 = vld [vmem:[%s886 + $0x1c] sm:$0xf]
  %v903 = vunpack.c.l.b16 %v887
  %v904 = vunpack.c.l.b16 %v888
  %v905 = vunpack.c.l.b16 %v889
  %v906 = vunpack.c.l.b16 %v890
  %v907 = vunpack.c.l.b16 %v891
  %v908 = vunpack.c.l.b16 %v892
  %v909 = vunpack.c.l.b16 %v893
  %v910 = vunpack.c.l.b16 %v894
  %v911 = vpack.c.b16 %v904, %v903
  %v912 = vpack.c.b16 %v906, %v905
  %v913 = vpack.c.b16 %v908, %v907
  %v914 = vpack.c.b16 %v910, %v909
  %v920 = vsel %vm537, %v659, 0
  %v923 = vsel %vm537, %v660, 0
  %v926 = vsel %vm537, %v661, 0
  %v929 = vsel %vm537, %v662, 0
  %v932 = vsel %vm537, %v663, 0
  %v935 = vsel %vm537, %v664, 0
  %v938 = vsel %vm537, %v665, 0
  %v941 = vsel %vm537, %v666, 0
  %943 = vmatpush.bf16.msra.mxu0 0
  %944 = vmatpush.bf16.msra.mxu0 0
  %945 = vmatpush.bf16.msra.mxu0 0
  %946 = vmatpush.bf16.msra.mxu0 0
  %947 = vmatpush.bf16.msra.mxu0 %v914
  %948 = vmatpush.bf16.msra.mxu0 %v913
  %949 = vmatpush.bf16.msra.mxu0 %v912
  %950 = vmatpush.bf16.msra.mxu0 %v911
  %951 = vmatmul.bf16.gmra.mxu0 %v920
  %v952 = vpop.f32.mrf.mxu0
  %v953 = vadd.f32 0.0, %v952
  %v954 = vpop.f32.mrf.mxu0
  %v955 = vadd.f32 0.0, %v954
  %956 = vmatmul.bf16.gmra.mxu0 %v923
  %v957 = vpop.f32.mrf.mxu0
  %v958 = vadd.f32 0.0, %v957
  %v959 = vpop.f32.mrf.mxu0
  %v960 = vadd.f32 0.0, %v959
  %961 = vmatmul.bf16.gmra.mxu0 %v926
  %v962 = vpop.f32.mrf.mxu0
  %v963 = vadd.f32 0.0, %v962
  %v964 = vpop.f32.mrf.mxu0
  %v965 = vadd.f32 0.0, %v964
  %966 = vmatmul.bf16.gmra.mxu0 %v929
  %v967 = vpop.f32.mrf.mxu0
  %v968 = vadd.f32 0.0, %v967
  %v969 = vpop.f32.mrf.mxu0
  %v970 = vadd.f32 0.0, %v969
  %971 = vmatmul.bf16.gmra.mxu0 %v932
  %v972 = vpop.f32.mrf.mxu0
  %v973 = vadd.f32 0.0, %v972
  %v974 = vpop.f32.mrf.mxu0
  %v975 = vadd.f32 0.0, %v974
  %976 = vmatmul.bf16.gmra.mxu0 %v935
  %v977 = vpop.f32.mrf.mxu0
  %v978 = vadd.f32 0.0, %v977
  %v979 = vpop.f32.mrf.mxu0
  %v980 = vadd.f32 0.0, %v979
  %981 = vmatmul.bf16.gmra.mxu0 %v938
  %v982 = vpop.f32.mrf.mxu0
  %v983 = vadd.f32 0.0, %v982
  %v984 = vpop.f32.mrf.mxu0
  %v985 = vadd.f32 0.0, %v984
  %986 = vmatmul.bf16.gmra.mxu0 %v941
  %v987 = vpop.f32.mrf.mxu0
  %v988 = vadd.f32 0.0, %v987
  %v989 = vpop.f32.mrf.mxu0
  %v990 = vadd.f32 0.0, %v989
  %991 = vdwg.mxu0
  %v992 = vadd.f32 %v847, %v953
  %v993 = vadd.f32 %v849, %v955
  %v994 = vadd.f32 %v852, %v958
  %v995 = vadd.f32 %v854, %v960
  %v996 = vadd.f32 %v857, %v963
  %v997 = vadd.f32 %v859, %v965
  %v998 = vadd.f32 %v862, %v968
  %v999 = vadd.f32 %v864, %v970
  %v1000 = vadd.f32 %v867, %v973
  %v1001 = vadd.f32 %v869, %v975
  %v1002 = vadd.f32 %v872, %v978
  %v1003 = vadd.f32 %v874, %v980
  %v1004 = vadd.f32 %v877, %v983
  %v1005 = vadd.f32 %v879, %v985
  %v1006 = vadd.f32 %v882, %v988
  %v1007 = vadd.f32 %v884, %v990
  %v1008 = vld [vmem:[%s4] sm:$0x1]
  %v1010 = vperm.slane %v1008, 0
  %v1012 = vadd.f32 %v992, %v1010
  %v1013 = vadd.f32 %v993, %v1010
  %v1014 = vadd.f32 %v994, %v1010
  %v1015 = vadd.f32 %v995, %v1010
  %v1016 = vadd.f32 %v996, %v1010
  %v1017 = vadd.f32 %v997, %v1010
  %v1018 = vadd.f32 %v998, %v1010
  %v1019 = vadd.f32 %v999, %v1010
  %v1020 = vadd.f32 %v1000, %v1010
  %v1021 = vadd.f32 %v1001, %v1010
  %v1022 = vadd.f32 %v1002, %v1010
  %v1023 = vadd.f32 %v1003, %v1010
  %v1024 = vadd.f32 %v1004, %v1010
  %v1025 = vadd.f32 %v1005, %v1010
  %v1026 = vadd.f32 %v1006, %v1010
  %v1027 = vadd.f32 %v1007, %v1010
  %v1028 = vmax.f32 %v1012, 0.0
  %v1029 = vmax.f32 %v1013, 0.0
  %v1030 = vmax.f32 %v1014, 0.0
  %v1031 = vmax.f32 %v1015, 0.0
  %v1032 = vmax.f32 %v1016, 0.0
  %v1033 = vmax.f32 %v1017, 0.0
  %v1034 = vmax.f32 %v1018, 0.0
  %v1035 = vmax.f32 %v1019, 0.0
  %v1036 = vmax.f32 %v1020, 0.0
  %v1037 = vmax.f32 %v1021, 0.0
  %v1038 = vmax.f32 %v1022, 0.0
  %v1039 = vmax.f32 %v1023, 0.0
  %v1040 = vmax.f32 %v1024, 0.0
  %v1041 = vmax.f32 %v1025, 0.0
  %v1042 = vmax.f32 %v1026, 0.0
  %v1043 = vmax.f32 %v1027, 0.0
  %1044 = vst [vmem:[#allocation4] sm:$0xff] %v1028
  %1045 = vst [vmem:[#allocation4 + $0x8] sm:$0xff] %v1029
  %1046 = vst [vmem:[#allocation4 + $0x10] sm:$0xff] %v1030
  %1047 = vst [vmem:[#allocation4 + $0x18] sm:$0xff] %v1031
  %1048 = vst [vmem:[#allocation4 + $0x20] sm:$0xff] %v1032
  %1049 = vst [vmem:[#allocation4 + $0x28] sm:$0xff] %v1033
  %1050 = vst [vmem:[#allocation4 + $0x30] sm:$0xff] %v1034
  %1051 = vst [vmem:[#allocation4 + $0x38] sm:$0xff] %v1035
  %1052 = vst [vmem:[#allocation4 + $0x40] sm:$0xff] %v1036
  %1053 = vst [vmem:[#allocation4 + $0x48] sm:$0xff] %v1037
  %1054 = vst [vmem:[#allocation4 + $0x50] sm:$0xff] %v1038
  %1055 = vst [vmem:[#allocation4 + $0x58] sm:$0xff] %v1039
  %1056 = vst [vmem:[#allocation4 + $0x60] sm:$0xff] %v1040
  %1057 = vst [vmem:[#allocation4 + $0x68] sm:$0xff] %v1041
  %1058 = vst [vmem:[#allocation4 + $0x70] sm:$0xff] %v1042
  %1059 = vst [vmem:[#allocation4 + $0x78] sm:$0xff] %v1043
  %v1060 = vld [vmem:[#allocation4] ss:$2 sm:$0xff]
  %s1061 = scalar_lea.vmem [#allocation4], 16
  %v1062 = vld [vmem:[%s1061] ss:$2 sm:$0xff]
  %s1063 = scalar_lea.vmem [#allocation4], 32
  %v1064 = vld [vmem:[%s1063] ss:$2 sm:$0xff]
  %s1065 = scalar_lea.vmem [#allocation4], 48
  %v1066 = vld [vmem:[%s1065] ss:$2 sm:$0xff]
  %s1067 = scalar_lea.vmem [#allocation4], 64
  %v1068 = vld [vmem:[%s1067] ss:$2 sm:$0xff]
  %s1069 = scalar_lea.vmem [#allocation4], 80
  %v1070 = vld [vmem:[%s1069] ss:$2 sm:$0xff]
  %s1071 = scalar_lea.vmem [#allocation4], 96
  %v1072 = vld [vmem:[%s1071] ss:$2 sm:$0xff]
  %s1073 = scalar_lea.vmem [#allocation4], 112
  %v1074 = vld [vmem:[%s1073] ss:$2 sm:$0xff]
  %s1075 = scalar_lea.vmem [#allocation4], 1
  %v1076 = vld [vmem:[%s1075] ss:$2 sm:$0xff]
  %s1077 = scalar_lea.vmem [#allocation4], 17
  %v1078 = vld [vmem:[%s1077] ss:$2 sm:$0xff]
  %s1079 = scalar_lea.vmem [#allocation4], 33
  %v1080 = vld [vmem:[%s1079] ss:$2 sm:$0xff]
  %s1081 = scalar_lea.vmem [#allocation4], 49
  %v1082 = vld [vmem:[%s1081] ss:$2 sm:$0xff]
  %s1083 = scalar_lea.vmem [#allocation4], 65
  %v1084 = vld [vmem:[%s1083] ss:$2 sm:$0xff]
  %s1085 = scalar_lea.vmem [#allocation4], 81
  %v1086 = vld [vmem:[%s1085] ss:$2 sm:$0xff]
  %s1087 = scalar_lea.vmem [#allocation4], 97
  %v1088 = vld [vmem:[%s1087] ss:$2 sm:$0xff]
  %s1089 = scalar_lea.vmem [#allocation4], 113
  %v1090 = vld [vmem:[%s1089] ss:$2 sm:$0xff]
  %v1091 = vmax.f32 %v1060, %v1076
  %v1092 = vmax.f32 %v1062, %v1078
  %v1093 = vmax.f32 %v1064, %v1080
  %v1094 = vmax.f32 %v1066, %v1082
  %v1095 = vmax.f32 %v1068, %v1084
  %v1096 = vmax.f32 %v1070, %v1086
  %v1097 = vmax.f32 %v1072, %v1088
  %v1098 = vmax.f32 %v1074, %v1090
  %1107 = vrot.lane.b32.xlu0 %v1091, 64
  %v1108 = vpop.permute.xlu0 %1107
  %1109 = vrot.lane.b32.xlu0 %v1092, 64
  %v1110 = vpop.permute.xlu0 %1109
  %1111 = vrot.lane.b32.xlu0 %v1093, 64
  %v1112 = vpop.permute.xlu0 %1111
  %1113 = vrot.lane.b32.xlu0 %v1094, 64
  %v1114 = vpop.permute.xlu0 %1113
  %1115 = vrot.lane.b32.xlu0 %v1095, 64
  %v1116 = vpop.permute.xlu0 %1115
  %1117 = vrot.lane.b32.xlu0 %v1096, 64
  %v1118 = vpop.permute.xlu0 %1117
  %1119 = vrot.lane.b32.xlu0 %v1097, 64
  %v1120 = vpop.permute.xlu0 %1119
  %1121 = vrot.lane.b32.xlu0 %v1098, 64
  %v1122 = vpop.permute.xlu0 %1121
  %v1131 = vmax.f32 %v1091, %v1108
  %v1132 = vmax.f32 %v1092, %v1110
  %v1133 = vmax.f32 %v1093, %v1112
  %v1134 = vmax.f32 %v1094, %v1114
  %v1135 = vmax.f32 %v1095, %v1116
  %v1136 = vmax.f32 %v1096, %v1118
  %v1137 = vmax.f32 %v1097, %v1120
  %v1138 = vmax.f32 %v1098, %v1122
  %1139 = vst.msk [vmem:[#allocation5] sm:$0xff] %vm537, %v1131
  %1140 = vst.msk [vmem:[#allocation5 + $0x8] sm:$0xff] %vm537, %v1132
  %1141 = vst.msk [vmem:[#allocation5 + $0x10] sm:$0xff] %vm537, %v1133
  %1142 = vst.msk [vmem:[#allocation5 + $0x18] sm:$0xff] %vm537, %v1134
  %1143 = vst.msk [vmem:[#allocation5 + $0x20] sm:$0xff] %vm537, %v1135
  %1144 = vst.msk [vmem:[#allocation5 + $0x28] sm:$0xff] %vm537, %v1136
  %1145 = vst.msk [vmem:[#allocation5 + $0x30] sm:$0xff] %vm537, %v1137
  %1146 = vst.msk [vmem:[#allocation5 + $0x38] sm:$0xff] %vm537, %v1138
  %v1147 = vld [vmem:[#allocation5] ss:$4 sm:$0xff]
  %s1148 = scalar_lea.vmem [#allocation5], 32
  %v1149 = vld [vmem:[%s1148] ss:$4 sm:$0xff]
  %v1150 = vpack.c.bf16 %v1149, %v1147
  %v1151 = vld [vmem:[%s6] sm:$0xf]
  %v1152 = vld [vmem:[%s6 + $0x4] sm:$0xf]
  %v1153 = vld [vmem:[%s6 + $0x8] sm:$0xf]
  %v1154 = vld [vmem:[%s6 + $0xc] sm:$0xf]
  %v1155 = vld [vmem:[%s6 + $0x10] sm:$0xf]
  %v1156 = vld [vmem:[%s6 + $0x14] sm:$0xf]
  %v1157 = vld [vmem:[%s6 + $0x18] sm:$0xf]
  %v1158 = vld [vmem:[%s6 + $0x1c] sm:$0xf]
  %s1159 = scalar_lea.vmem [#allocation5], 1
  %v1160 = vld [vmem:[%s1159] ss:$4 sm:$0xff]
  %s1161 = scalar_lea.vmem [#allocation5], 33
  %v1162 = vld [vmem:[%s1161] ss:$4 sm:$0xff]
  %v1163 = vpack.c.bf16 %v1162, %v1160
  %s1164 = scalar_lea.vmem %s6, 32
  %v1165 = vld [vmem:[%s1164] sm:$0xf]
  %v1166 = vld [vmem:[%s1164 + $0x4] sm:$0xf]
  %v1167 = vld [vmem:[%s1164 + $0x8] sm:$0xf]
  %v1168 = vld [vmem:[%s1164 + $0xc] sm:$0xf]
  %v1169 = vld [vmem:[%s1164 + $0x10] sm:$0xf]
  %v1170 = vld [vmem:[%s1164 + $0x14] sm:$0xf]
  %v1171 = vld [vmem:[%s1164 + $0x18] sm:$0xf]
  %v1172 = vld [vmem:[%s1164 + $0x1c] sm:$0xf]
  %v1181 = vunpack.c.l.b16 %v1165
  %v1182 = vunpack.c.l.b16 %v1166
  %v1183 = vunpack.c.l.b16 %v1167
  %v1184 = vunpack.c.l.b16 %v1168
  %v1185 = vunpack.c.l.b16 %v1169
  %v1186 = vunpack.c.l.b16 %v1170
  %v1187 = vunpack.c.l.b16 %v1171
  %v1188 = vunpack.c.l.b16 %v1172
  %v1189 = vpack.c.b16 %v1182, %v1181
  %v1190 = vpack.c.b16 %v1184, %v1183
  %v1191 = vpack.c.b16 %v1186, %v1185
  %v1192 = vpack.c.b16 %v1188, %v1187
  %v1198 = vsel %vm537, %v1163, 0
  %1200 = vmatpush.bf16.msra.mxu0 0
  %1201 = vmatpush.bf16.msra.mxu0 0
  %1202 = vmatpush.bf16.msra.mxu0 0
  %1203 = vmatpush.bf16.msra.mxu0 0
  %1204 = vmatpush.bf16.msra.mxu0 %v1192
  %1205 = vmatpush.bf16.msra.mxu0 %v1191
  %1206 = vmatpush.bf16.msra.mxu0 %v1190
  %1207 = vmatpush.bf16.msra.mxu0 %v1189
  %1208 = vmatmul.bf16.gmra.mxu0 %v1198
  %v1209 = vpop.f32.mrf.mxu0
  %v1210 = vadd.f32 0.0, %v1209
  %v1211 = vpop.f32.mrf.mxu0
  %v1212 = vadd.f32 0.0, %v1211
  %1213 = vdwg.mxu0
  %v1222 = vunpack.c.l.b16 %v1151
  %v1223 = vunpack.c.l.b16 %v1152
  %v1224 = vunpack.c.l.b16 %v1153
  %v1225 = vunpack.c.l.b16 %v1154
  %v1226 = vunpack.c.l.b16 %v1155
  %v1227 = vunpack.c.l.b16 %v1156
  %v1228 = vunpack.c.l.b16 %v1157
  %v1229 = vunpack.c.l.b16 %v1158
  %v1230 = vpack.c.b16 %v1223, %v1222
  %v1231 = vpack.c.b16 %v1225, %v1224
  %v1232 = vpack.c.b16 %v1227, %v1226
  %v1233 = vpack.c.b16 %v1229, %v1228
  %v1239 = vsel %vm537, %v1150, 0
  %1241 = vmatpush.bf16.msra.mxu0 0
  %1242 = vmatpush.bf16.msra.mxu0 0
  %1243 = vmatpush.bf16.msra.mxu0 0
  %1244 = vmatpush.bf16.msra.mxu0 0
  %1245 = vmatpush.bf16.msra.mxu0 %v1233
  %1246 = vmatpush.bf16.msra.mxu0 %v1232
  %1247 = vmatpush.bf16.msra.mxu0 %v1231
  %1248 = vmatpush.bf16.msra.mxu0 %v1230
  %1249 = vmatmul.bf16.gmra.mxu0 %v1239
  %v1250 = vpop.f32.mrf.mxu0
  %v1251 = vadd.f32 %v1210, %v1250
  %v1252 = vpop.f32.mrf.mxu0
  %v1253 = vadd.f32 %v1212, %v1252
  %1254 = vdwg.mxu0
  %s1255 = scalar_lea.vmem [#allocation5], 2
  %v1256 = vld [vmem:[%s1255] ss:$4 sm:$0xff]
  %s1257 = scalar_lea.vmem [#allocation5], 34
  %v1258 = vld [vmem:[%s1257] ss:$4 sm:$0xff]
  %v1259 = vpack.c.bf16 %v1258, %v1256
  %s1260 = scalar_lea.vmem %s6, 64
  %v1261 = vld [vmem:[%s1260] sm:$0xf]
  %v1262 = vld [vmem:[%s1260 + $0x4] sm:$0xf]
  %v1263 = vld [vmem:[%s1260 + $0x8] sm:$0xf]
  %v1264 = vld [vmem:[%s1260 + $0xc] sm:$0xf]
  %v1265 = vld [vmem:[%s1260 + $0x10] sm:$0xf]
  %v1266 = vld [vmem:[%s1260 + $0x14] sm:$0xf]
  %v1267 = vld [vmem:[%s1260 + $0x18] sm:$0xf]
  %v1268 = vld [vmem:[%s1260 + $0x1c] sm:$0xf]
  %v1277 = vunpack.c.l.b16 %v1261
  %v1278 = vunpack.c.l.b16 %v1262
  %v1279 = vunpack.c.l.b16 %v1263
  %v1280 = vunpack.c.l.b16 %v1264
  %v1281 = vunpack.c.l.b16 %v1265
  %v1282 = vunpack.c.l.b16 %v1266
  %v1283 = vunpack.c.l.b16 %v1267
  %v1284 = vunpack.c.l.b16 %v1268
  %v1285 = vpack.c.b16 %v1278, %v1277
  %v1286 = vpack.c.b16 %v1280, %v1279
  %v1287 = vpack.c.b16 %v1282, %v1281
  %v1288 = vpack.c.b16 %v1284, %v1283
  %v1294 = vsel %vm537, %v1259, 0
  %1296 = vmatpush.bf16.msra.mxu0 0
  %1297 = vmatpush.bf16.msra.mxu0 0
  %1298 = vmatpush.bf16.msra.mxu0 0
  %1299 = vmatpush.bf16.msra.mxu0 0
  %1300 = vmatpush.bf16.msra.mxu0 %v1288
  %1301 = vmatpush.bf16.msra.mxu0 %v1287
  %1302 = vmatpush.bf16.msra.mxu0 %v1286
  %1303 = vmatpush.bf16.msra.mxu0 %v1285
  %1304 = vmatmul.bf16.gmra.mxu0 %v1294
  %v1305 = vpop.f32.mrf.mxu0
  %v1306 = vadd.f32 0.0, %v1305
  %v1307 = vpop.f32.mrf.mxu0
  %v1308 = vadd.f32 0.0, %v1307
  %1309 = vdwg.mxu0
  %v1310 = vadd.f32 %v1251, %v1306
  %v1311 = vadd.f32 %v1253, %v1308
  %s1312 = scalar_lea.vmem [#allocation5], 3
  %v1313 = vld [vmem:[%s1312] ss:$4 sm:$0xff]
  %s1314 = scalar_lea.vmem [#allocation5], 35
  %v1315 = vld [vmem:[%s1314] ss:$4 sm:$0xff]
  %v1316 = vpack.c.bf16 %v1315, %v1313
  %s1317 = scalar_lea.vmem %s6, 96
  %v1318 = vld [vmem:[%s1317] sm:$0xf]
  %v1319 = vld [vmem:[%s1317 + $0x4] sm:$0xf]
  %v1320 = vld [vmem:[%s1317 + $0x8] sm:$0xf]
  %v1321 = vld [vmem:[%s1317 + $0xc] sm:$0xf]
  %v1322 = vld [vmem:[%s1317 + $0x10] sm:$0xf]
  %v1323 = vld [vmem:[%s1317 + $0x14] sm:$0xf]
  %v1324 = vld [vmem:[%s1317 + $0x18] sm:$0xf]
  %v1325 = vld [vmem:[%s1317 + $0x1c] sm:$0xf]
  %v1334 = vunpack.c.l.b16 %v1318
  %v1335 = vunpack.c.l.b16 %v1319
  %v1336 = vunpack.c.l.b16 %v1320
  %v1337 = vunpack.c.l.b16 %v1321
  %v1338 = vunpack.c.l.b16 %v1322
  %v1339 = vunpack.c.l.b16 %v1323
  %v1340 = vunpack.c.l.b16 %v1324
  %v1341 = vunpack.c.l.b16 %v1325
  %v1342 = vpack.c.b16 %v1335, %v1334
  %v1343 = vpack.c.b16 %v1337, %v1336
  %v1344 = vpack.c.b16 %v1339, %v1338
  %v1345 = vpack.c.b16 %v1341, %v1340
  %v1351 = vsel %vm537, %v1316, 0
  %1353 = vmatpush.bf16.msra.mxu0 0
  %1354 = vmatpush.bf16.msra.mxu0 0
  %1355 = vmatpush.bf16.msra.mxu0 0
  %1356 = vmatpush.bf16.msra.mxu0 0
  %1357 = vmatpush.bf16.msra.mxu0 %v1345
  %1358 = vmatpush.bf16.msra.mxu0 %v1344
  %1359 = vmatpush.bf16.msra.mxu0 %v1343
  %1360 = vmatpush.bf16.msra.mxu0 %v1342
  %1361 = vmatmul.bf16.gmra.mxu0 %v1351
  %v1362 = vpop.f32.mrf.mxu0
  %v1363 = vadd.f32 0.0, %v1362
  %v1364 = vpop.f32.mrf.mxu0
  %v1365 = vadd.f32 0.0, %v1364
  %1366 = vdwg.mxu0
  %v1367 = vadd.f32 %v1310, %v1363
  %v1368 = vadd.f32 %v1311, %v1365
  %v1369 = vld [vmem:[%s7] sm:$0x1]
  %v1371 = vperm.slane %v1369, 0
  %v1373 = vadd.f32 %v1367, %v1371
  %v1374 = vadd.f32 %v1368, %v1371
  %v1375 = vmax.f32 %v1373, 0.0
  %v1376 = vmax.f32 %v1374, 0.0
  %v1377 = vld [vmem:[%s8] sm:$0x1]
  %v1379 = vperm.slane %v1377, 0
  %v1381 = vmul.f32 %v1375, %v1379
  %v1382 = vmul.f32 %v1376, %v1379
  %v1383 = vsel %vm537, %v1381, 0.0
  %1384 = vadd.xlane.f32.xlu0 %v1383
  %v1385 = vpop.xlane.xlu0 %1384
  %v1386 = vsel %vm537, %v1382, 0.0
  %1387 = vadd.xlane.f32.xlu0 %v1386
  %v1388 = vpop.xlane.xlu0 %1387
  %v1389 = vld [vmem:[#allocation6] sm:$0x1]
  %v1391 = vperm.slane %v1389, 0
  %v1393 = vadd.f32 %v1385, %v1391
  %v1394 = vadd.f32 %v1388, %v1391
  %v1395 = vsub.f32 0.0, %v1393
  %v1396 = vsub.f32 0.0, %v1394
  %v1397 = vmul.f32 %v1395, 1.442695
  %v1398 = vpow.pop %v1397
  %v1399 = vmul.f32 %v1396, 1.442695
  %v1400 = vpow.pop %v1399
  %v1401 = vadd.f32 %v1398, 1.0
  %v1402 = vadd.f32 %v1400, 1.0
  %v1403 = vrcp.pop %v1401
  %v1404 = vmul.f32 %v1401, %v1403
  %v1405 = vsub.f32 1.0, %v1404
  %v1406 = vmul.f32 %v1403, %v1405
  %v1407 = vadd.f32 %v1403, %v1406
  %vm1408 = vweird.f32 %v1401
  %vm1409 = vweird.f32 %v1403
  %vm1410 = vmor %vm1408, %vm1409
  %v1411 = vsel %vm1410, %v1403, %v1407
  %v1412 = vand.u32 2147483647, %v1401
  %vm1413 = vcmp.eq.f32.partialorder %v1412, 8.507059e+37
  %v1414 = vand.u32 %v1401, 2147483648
  %v1415 = vor.u32 1.1754944e-38, %v1414
  %v1416 = vsel %vm1413, %v1415, %v1411
  %v1417 = vmul.f32 1.0, %v1416
  %v1418 = vrcp.pop %v1402
  %v1419 = vmul.f32 %v1402, %v1418
  %v1420 = vsub.f32 1.0, %v1419
  %v1421 = vmul.f32 %v1418, %v1420
  %v1422 = vadd.f32 %v1418, %v1421
  %vm1423 = vweird.f32 %v1402
  %vm1424 = vweird.f32 %v1418
  %vm1425 = vmor %vm1423, %vm1424
  %v1426 = vsel %vm1425, %v1418, %v1422
  %v1427 = vand.u32 2147483647, %v1402
  %vm1428 = vcmp.eq.f32.partialorder %v1427, 8.507059e+37
  %v1429 = vand.u32 %v1402, 2147483648
  %v1430 = vor.u32 1.1754944e-38, %v1429
  %v1431 = vsel %vm1428, %v1430, %v1426
  %v1432 = vmul.f32 1.0, %v1431
  %vm1433 = vcmask 7168
  %1434 = vst.msk [vmem:[%s10] sm:$0xff] %vm1433, %v1417
  %1435 = vst.msk [vmem:[%s10 + $0x8] sm:$0xff] %vm1433, %v1432
  // Predicated region
  $region42: #{cnn_forward.1} parent=0 // pred_check
    _
  $region43: #{cnn_forward.1} parent=0 // pred_check_branch
    %1437 = sbr.rel (0) target = $region45
  $region44: #{cnn_forward.1} parent=0 // pred_region
    _
  $region45: #{cnn_forward.1} parent=0 // pred_fallthru
    _
  // Predicated region
  $region46: #{cnn_forward.1} parent=0 // pred_check
    _
  $region47: #{cnn_forward.1} parent=0 // pred_check_branch
    %1439 = sbr.rel (0) target = $region49
  $region48: #{cnn_forward.1} parent=0 // pred_region
    _
  $region49: #{cnn_forward.1} parent=0 // pred_fallthru
    _

</llo_original>
